<compile_context>
chip_gen: v5e
topology: v5e:2x2
jax: 0.10.0
libtpu: 0.0.40
codegen_flags: <defaults>
</compile_context>

<pallas_src>
import functools
import math

import jax
import jax.numpy as jnp
from jax.experimental import pallas as pl
from jax.experimental.pallas import tpu as pltpu

_LANE = 128


def _round_up(x, m):
    return ((x + m - 1) // m) * m


def _mlp_kernel(x_ref,
                w1_ref, b1_ref,
                w2_ref, b2_ref,
                w3_ref, b3_ref,
                w5_ref, b5_ref,
                o_ref,
                *, relu_dtype):
    """One batch tile: 3x (Linear+relu) + Linear+sigmoid.

    bf16 operands feed the MXU; every jnp.dot accumulates in f32.  The relu runs in
    `relu_dtype` (bf16 on v6e/v7x, f32 on v5e) and the result is re-packed to bf16 for
    the next MXU pass.  Bias adds and the sigmoid epilogue stay in f32.
    """
    x = x_ref[...]                                                   # bf16 [tile_b, in]

    h = jnp.dot(x, w1_ref[...], preferred_element_type=jnp.float32) + b1_ref[...]
    h = jnp.maximum(h.astype(relu_dtype), 0.0).astype(jnp.bfloat16)

    h = jnp.dot(h, w2_ref[...], preferred_element_type=jnp.float32) + b2_ref[...]
    h = jnp.maximum(h.astype(relu_dtype), 0.0).astype(jnp.bfloat16)

    h = jnp.dot(h, w3_ref[...], preferred_element_type=jnp.float32) + b3_ref[...]
    h = jnp.maximum(h.astype(relu_dtype), 0.0).astype(jnp.bfloat16)

    z = jnp.dot(h, w5_ref[...], preferred_element_type=jnp.float32) + b5_ref[...]
    o_ref[...] = jax.nn.sigmoid(z).astype(o_ref.dtype)               # f32 [tile_b, out]


def _tpu_info():
    """(vmem_capacity_bytes, is_v5e, is_v7) with conservative fallbacks."""
    vmem = 64 * 1024 * 1024          # conservative default (v7x per-TC)
    kind = ""
    try:
        vmem = int(pltpu.get_tpu_info().vmem_capacity_bytes)
    except Exception:
        pass
    try:
        kind = jax.devices()[0].device_kind.lower()
    except Exception:
        pass
    is_v5e = ("v5e" in kind) or ("v5 lite" in kind) or ("v5lite" in kind)
    is_v7 = "v7" in kind
    return vmem, is_v5e, is_v7


def _pick_tile_b(B, max_rows, prefer_even_steps):
    """Largest multiple-of-16 batch tile (<= 1024) that fits the VMEM budget.

    Whole batch in one grid step when it fits (per-step overhead ~0.35us, and a 1-step
    grid avoids pure prologue/epilogue).  On v7x we prefer an even step count so both
    TensorCores get work when the grid is sharded ("parallel") across cores.
    """
    max_rows = max(16, min(int(max_rows), 1024))
    if B <= max_rows:
        return B                                   # single grid step
    divisors = [t for t in range(16, max_rows + 1, 16) if B % t == 0]
    if not divisors:
        return B                                   # ragged batch: run as one block
    tile = max(divisors)
    if prefer_even_steps:
        steps = B // tile
        if steps > 1 and steps % 2 == 1 and (tile // 2) in divisors:
            tile //= 2                             # even step count for the 2 TCs
    return tile


def neuralnetwork_forward(x, params, *, tile_b=None):
    """MLP forward pass as a single pallas_call tiled over the batch axis."""
    (w1, b1), (w2, b2), (w3, b3), (w5, b5) = params
    B, in_dim = x.shape
    assert w1.shape[0] == in_dim
    h1, h2, h3 = w1.shape[1], w2.shape[1], w3.shape[1]
    out_dim = w5.shape[1]

    # --- MXU/lane-dense hidden widths (zero padding is numerically exact) ------------
    h1p, h2p, h3p = (_round_up(h, _LANE) for h in (h1, h2, h3))

    def _pad_w(w, rows, cols):
        if w.shape == (rows, cols):
            return w
        return jnp.zeros((rows, cols), w.dtype).at[:w.shape[0], :w.shape[1]].set(w)

    def _pad_vec(b, cols):
        if b.shape[0] == cols:
            return b
        return jnp.zeros((cols,), b.dtype).at[:b.shape[0]].set(b)

    w1p = _pad_w(w1, in_dim, h1p)
    w2p = _pad_w(w2, h1p, h2p)
    w3p = _pad_w(w3, h2p, h3p)
    w5p = _pad_w(w5, h3p, out_dim)
    b1p, b2p, b3p = _pad_vec(b1, h1p), _pad_vec(b2, h2p), _pad_vec(b3, h3p)

    # bf16 activations + weights feed the MXU; f32 biases for the f32 epilogue.
    xb = x.astype(jnp.bfloat16)
    w1b, w2b, w3b, w5b = (w.astype(jnp.bfloat16) for w in (w1p, w2p, w3p, w5p))
    b1r, b2r, b3r, b5r = (b.reshape(1, -1).astype(jnp.float32)
                          for b in (b1p, b2p, b3p, b5))

    # --- generation-aware VMEM budget -------------------------------------------------
    vmem_cap, is_v5e, is_v7 = _tpu_info()
    relu_dtype = jnp.float32 if is_v5e else jnp.bfloat16     # v5e VPU has no bf16

    weight_bytes = 2 * (in_dim * h1p + h1p * h2p + h2p * h3p + h3p * out_dim)   # bf16
    bias_bytes = 4 * (h1p + h2p + h3p + out_dim)                                 # f32
    resident = weight_bytes + bias_bytes                     # single-buffered weights

    # Per-batch-row VMEM: double-buffered x/out tiles + f32 accum + bf16 intermediates.
    per_row = 2 * (in_dim * 2) + 2 * (out_dim * 4)
    per_row += (h1p + h2p + h3p) * (4 + 2) + out_dim * 4

    usable = int(0.85 * vmem_cap)                            # headroom for internal scratch
    budget = usable - resident - (2 << 20)

    if tile_b is None:
        tile_b = _pick_tile_b(B, budget // max(per_row, 1), prefer_even_steps=is_v7)
    if tile_b < B:
        assert B % tile_b == 0, "batch must be divisible by tile_b"
        # (8,128) block constraint + bf16 packs 16 rows per sublane-packed vreg.
        assert tile_b % 16 == 0, "tile_b must be a multiple of 16 when tiling the batch"
    grid = (pl.cdiv(B, tile_b),)

    needed = 2 * resident + tile_b * per_row + (2 << 20)
    vmem_limit = int(min(max(needed, 16 << 20), max(usable, 16 << 20)))

    flops = 2 * B * (in_dim * h1p + h1p * h2p + h2p * h3p + h3p * out_dim)
    bytes_accessed = int(xb.size * 2 + weight_bytes + bias_bytes + B * out_dim * 4)
    cost = pl.CostEstimate(flops=flops, transcendentals=B * out_dim,
                           bytes_accessed=bytes_accessed)

    kernel = functools.partial(_mlp_kernel, relu_dtype=relu_dtype)

    def _resident_spec(shape, buffers):
        # Grid-invariant block (same (0,0) index every step). `buffers=1` drops the
        # pointless double buffer; `buffers=None` keeps the backend default.
        if buffers is None:
            return pl.BlockSpec(shape, lambda i: (0, 0))
        return pl.BlockSpec(shape, lambda i: (0, 0),
                            pipeline_mode=pl.Buffered(buffer_count=buffers))

    def _call(weight_buffers):
        return pl.pallas_call(
            kernel,
            out_shape=jax.ShapeDtypeStruct((B, out_dim), jnp.float32),
            grid_spec=pltpu.PrefetchScalarGridSpec(
                num_scalar_prefetch=0,
                grid=grid,
                in_specs=[
                    pl.BlockSpec((tile_b, in_dim), lambda i: (i, 0)),
                    _resident_spec(w1b.shape, weight_buffers),
                    _resident_spec(b1r.shape, weight_buffers),
                    _resident_spec(w2b.shape, weight_buffers),
                    _resident_spec(b2r.shape, weight_buffers),
                    _resident_spec(w3b.shape, weight_buffers),
                    _resident_spec(b3r.shape, weight_buffers),
                    _resident_spec(w5b.shape, weight_buffers),
                    _resident_spec(b5r.shape, weight_buffers),
                ],
                out_specs=pl.BlockSpec((tile_b, out_dim), lambda i: (i, 0)),
            ),
            compiler_params=pltpu.CompilerParams(
                dimension_semantics=("parallel",),   # batch tiles shard across v7x's 2 TCs
                vmem_limit_bytes=vmem_limit,
            ),
            cost_estimate=cost,
        )(xb, w1b, b1r, w2b, b2r, w3b, b3r, w5b, b5r)

    try:
        return _call(1)          # single-buffered invariant weights/biases
    except Exception:
        # TODO(synk): drop once pl.Buffered(1) is guaranteed on the installed jax build.
        return _call(None)       # default buffering


def init_params(key, in_dim, n_hidden, out_dim):
    """PyTorch nn.Linear default init (uniform +/- 1/sqrt(fan_in)); weights stored [in, out]."""
    dims = [(in_dim, 4 * n_hidden),
            (4 * n_hidden, 2 * n_hidden),
            (2 * n_hidden, n_hidden),
            (n_hidden, out_dim)]
    params = []
    for fan_in, fan_out in dims:
        key, kw, kb = jax.random.split(key, 3)
        bound = 1.0 / math.sqrt(fan_in)
        w = jax.random.uniform(kw, (fan_in, fan_out), jnp.float32, -bound, bound)
        b = jax.random.uniform(kb, (fan_out,), jnp.float32, -bound, bound)
        params.append((w, b))
    return params


def reference_forward(x, params):
    """Pure-JAX reference using the same bf16-operand / f32-accumulate recipe."""
    def lin(h, w, b):
        return jnp.dot(h.astype(jnp.bfloat16), w.astype(jnp.bfloat16),
                       preferred_element_type=jnp.float32) + b
    (w1, b1), (w2, b2), (w3, b3), (w5, b5) = params
    h = jax.nn.relu(lin(x, w1, b1))
    h = jax.nn.relu(lin(h, w2, b2))
    h = jax.nn.relu(lin(h, w3, b3))
    return jax.nn.sigmoid(lin(h, w5, b5))


if __name__ == "__main__":
    key = jax.random.PRNGKey(0)
    key, kx, kx2 = jax.random.split(key, 3)

    # Small shapes consistent with the module.
    B, in_dim, n_hidden, out_dim = 64, 16, 32, 8
    params = init_params(key, in_dim, n_hidden, out_dim)

    # Case 1: auto tile -> whole batch in one grid step (no pipeline overhead).
    x = jax.random.normal(kx, (B, in_dim), jnp.float32)
    out = jax.block_until_ready(neuralnetwork_forward(x, params))
    ref = reference_forward(x, params)
    assert out.shape == (B, out_dim)
    assert jnp.allclose(out, ref, atol=2e-3, rtol=2e-3), "Pallas output mismatch (1-step)"

    # Case 2: explicit tiling -> exercises the multi-step pipelined grid path
    # (even step count, resident single-buffered weights reused across steps).
    B2 = 256
    x2 = jax.random.normal(kx2, (B2, in_dim), jnp.float32)
    out2 = jax.block_until_ready(neuralnetwork_forward(x2, params, tile_b=64))
    ref2 = reference_forward(x2, params)
    assert out2.shape == (B2, out_dim)
    assert jnp.allclose(out2, ref2, atol=2e-3, rtol=2e-3), "Pallas output mismatch (4-step)"

    print("KERNEL_OK")
</pallas_src>

<mosaic_0001>
module attributes {stable_mosaic.version = 11 : i64} {
  func.func @_mlp_kernel(%arg0: i32, %arg1: memref<64x16xbf16, #tpu.memory_space<vmem>>, %arg2: memref<16x128xbf16, #tpu.memory_space<vmem>>, %arg3: memref<1x128xf32, #tpu.memory_space<vmem>>, %arg4: memref<128x128xbf16, #tpu.memory_space<vmem>>, %arg5: memref<1x128xf32, #tpu.memory_space<vmem>>, %arg6: memref<128x128xbf16, #tpu.memory_space<vmem>>, %arg7: memref<1x128xf32, #tpu.memory_space<vmem>>, %arg8: memref<128x8xbf16, #tpu.memory_space<vmem>>, %arg9: memref<1x8xf32, #tpu.memory_space<vmem>>, %arg10: memref<64x8xf32, #tpu.memory_space<vmem>>) attributes {dimension_semantics = [#tpu.dimension_semantics<parallel>], iteration_bounds = array<i64: 1>, scalar_prefetch = 0 : i64, scratch_operands = 0 : i64, tpu.core_type = #tpu.core_type<tc>, window_params = [{transform_indices = @transform_0, window_bounds = array<i64: 64, 16>}, {pipeline_mode = #tpu.pipeline_mode<synchronous>, transform_indices = @transform_1, window_bounds = array<i64: 16, 128>}, {pipeline_mode = #tpu.pipeline_mode<synchronous>, transform_indices = @transform_2, window_bounds = array<i64: 1, 128>}, {pipeline_mode = #tpu.pipeline_mode<synchronous>, transform_indices = @transform_3, window_bounds = array<i64: 128, 128>}, {pipeline_mode = #tpu.pipeline_mode<synchronous>, transform_indices = @transform_4, window_bounds = array<i64: 1, 128>}, {pipeline_mode = #tpu.pipeline_mode<synchronous>, transform_indices = @transform_5, window_bounds = array<i64: 128, 128>}, {pipeline_mode = #tpu.pipeline_mode<synchronous>, transform_indices = @transform_6, window_bounds = array<i64: 1, 128>}, {pipeline_mode = #tpu.pipeline_mode<synchronous>, transform_indices = @transform_7, window_bounds = array<i64: 128, 8>}, {pipeline_mode = #tpu.pipeline_mode<synchronous>, transform_indices = @transform_8, window_bounds = array<i64: 1, 8>}, {transform_indices = @transform_9, window_bounds = array<i64: 64, 8>}]} {
    %c0 = arith.constant 0 : index
    %c0_0 = arith.constant 0 : index
    %0 = vector.load %arg1[%c0, %c0_0] : memref<64x16xbf16, #tpu.memory_space<vmem>>, vector<64x16xbf16>
    %c0_1 = arith.constant 0 : index
    %c0_2 = arith.constant 0 : index
    %1 = vector.load %arg2[%c0_1, %c0_2] : memref<16x128xbf16, #tpu.memory_space<vmem>>, vector<16x128xbf16>
    %cst = arith.constant dense<0.000000e+00> : vector<64x128xf32>
    %2 = tpu.matmul %0, %1, %cst {dimension_numbers = #tpu.dot_dimension_numbers<[1], [0], [0], [1], [0, 0, 1, 1], [], []>} : vector<64x16xbf16>, vector<16x128xbf16>, vector<64x128xf32> -> vector<64x128xf32>
    %c0_3 = arith.constant 0 : index
    %c0_4 = arith.constant 0 : index
    %3 = vector.load %arg3[%c0_3, %c0_4] : memref<1x128xf32, #tpu.memory_space<vmem>>, vector<1x128xf32>
    %4 = vector.broadcast %3 : vector<1x128xf32> to vector<64x128xf32>
    %5 = arith.addf %2, %4 : vector<64x128xf32>
    %6 = arith.truncf %5 : vector<64x128xf32> to vector<64x128xbf16>
    %cst_5 = arith.constant 0.000000e+00 : bf16
    %7 = vector.broadcast %cst_5 : bf16 to vector<64x128xbf16>
    %8 = arith.maximumf %6, %7 : vector<64x128xbf16>
    %c0_6 = arith.constant 0 : index
    %c0_7 = arith.constant 0 : index
    %9 = vector.load %arg4[%c0_6, %c0_7] : memref<128x128xbf16, #tpu.memory_space<vmem>>, vector<128x128xbf16>
    %cst_8 = arith.constant dense<0.000000e+00> : vector<64x128xf32>
    %10 = tpu.matmul %8, %9, %cst_8 {dimension_numbers = #tpu.dot_dimension_numbers<[1], [0], [0], [1], [0, 0, 1, 1], [], []>} : vector<64x128xbf16>, vector<128x128xbf16>, vector<64x128xf32> -> vector<64x128xf32>
    %c0_9 = arith.constant 0 : index
    %c0_10 = arith.constant 0 : index
    %11 = vector.load %arg5[%c0_9, %c0_10] : memref<1x128xf32, #tpu.memory_space<vmem>>, vector<1x128xf32>
    %12 = vector.broadcast %11 : vector<1x128xf32> to vector<64x128xf32>
    %13 = arith.addf %10, %12 : vector<64x128xf32>
    %14 = arith.truncf %13 : vector<64x128xf32> to vector<64x128xbf16>
    %cst_11 = arith.constant 0.000000e+00 : bf16
    %15 = vector.broadcast %cst_11 : bf16 to vector<64x128xbf16>
    %16 = arith.maximumf %14, %15 : vector<64x128xbf16>
    %c0_12 = arith.constant 0 : index
    %c0_13 = arith.constant 0 : index
    %17 = vector.load %arg6[%c0_12, %c0_13] : memref<128x128xbf16, #tpu.memory_space<vmem>>, vector<128x128xbf16>
    %cst_14 = arith.constant dense<0.000000e+00> : vector<64x128xf32>
    %18 = tpu.matmul %16, %17, %cst_14 {dimension_numbers = #tpu.dot_dimension_numbers<[1], [0], [0], [1], [0, 0, 1, 1], [], []>} : vector<64x128xbf16>, vector<128x128xbf16>, vector<64x128xf32> -> vector<64x128xf32>
    %c0_15 = arith.constant 0 : index
    %c0_16 = arith.constant 0 : index
    %19 = vector.load %arg7[%c0_15, %c0_16] : memref<1x128xf32, #tpu.memory_space<vmem>>, vector<1x128xf32>
    %20 = vector.broadcast %19 : vector<1x128xf32> to vector<64x128xf32>
    %21 = arith.addf %18, %20 : vector<64x128xf32>
    %22 = arith.truncf %21 : vector<64x128xf32> to vector<64x128xbf16>
    %cst_17 = arith.constant 0.000000e+00 : bf16
    %23 = vector.broadcast %cst_17 : bf16 to vector<64x128xbf16>
    %24 = arith.maximumf %22, %23 : vector<64x128xbf16>
    %c0_18 = arith.constant 0 : index
    %c0_19 = arith.constant 0 : index
    %25 = vector.load %arg8[%c0_18, %c0_19] : memref<128x8xbf16, #tpu.memory_space<vmem>>, vector<128x8xbf16>
    %cst_20 = arith.constant dense<0.000000e+00> : vector<64x8xf32>
    %26 = tpu.matmul %24, %25, %cst_20 {dimension_numbers = #tpu.dot_dimension_numbers<[1], [0], [0], [1], [0, 0, 1, 1], [], []>} : vector<64x128xbf16>, vector<128x8xbf16>, vector<64x8xf32> -> vector<64x8xf32>
    %c0_21 = arith.constant 0 : index
    %c0_22 = arith.constant 0 : index
    %27 = vector.load %arg9[%c0_21, %c0_22] : memref<1x8xf32, #tpu.memory_space<vmem>>, vector<1x8xf32>
    %28 = vector.broadcast %27 : vector<1x8xf32> to vector<64x8xf32>
    %29 = arith.addf %26, %28 : vector<64x8xf32>
    %30 = arith.negf %29 : vector<64x8xf32>
    %31 = math.exp %30 : vector<64x8xf32>
    %cst_23 = arith.constant 1.000000e+00 : f32
    %32 = vector.broadcast %cst_23 : f32 to vector<64x8xf32>
    %33 = arith.addf %32, %31 : vector<64x8xf32>
    %34 = arith.divf %32, %33 : vector<64x8xf32>
    %c0_24 = arith.constant 0 : index
    %c0_25 = arith.constant 0 : index
    %35 = vector.load %arg10[%c0_24, %c0_25] : memref<64x8xf32, #tpu.memory_space<vmem>>, vector<64x8xf32>
    tpu.vector_store %arg10[%c0_24, %c0_25], %34 {strides = array<i32>} : memref<64x8xf32, #tpu.memory_space<vmem>>, vector<64x8xf32>,
    return
  }
  func.func @transform_0(%arg0: i32) -> (i32, i32) {
    %c0_i32 = arith.constant 0 : i32
    %c0_i32_0 = arith.constant 0 : i32
    return %arg0, %c0_i32 : i32, i32
  }
  func.func @transform_1(%arg0: i32) -> (i32, i32) {
    %c0_i32 = arith.constant 0 : i32
    %c0_i32_0 = arith.constant 0 : i32
    %c0_i32_1 = arith.constant 0 : i32
    return %c0_i32, %c0_i32_0 : i32, i32
  }
  func.func @transform_2(%arg0: i32) -> (i32, i32) {
    %c0_i32 = arith.constant 0 : i32
    %c0_i32_0 = arith.constant 0 : i32
    %c0_i32_1 = arith.constant 0 : i32
    return %c0_i32, %c0_i32_0 : i32, i32
  }
  func.func @transform_3(%arg0: i32) -> (i32, i32) {
    %c0_i32 = arith.constant 0 : i32
    %c0_i32_0 = arith.constant 0 : i32
    %c0_i32_1 = arith.constant 0 : i32
    return %c0_i32, %c0_i32_0 : i32, i32
  }
  func.func @transform_4(%arg0: i32) -> (i32, i32) {
    %c0_i32 = arith.constant 0 : i32
    %c0_i32_0 = arith.constant 0 : i32
    %c0_i32_1 = arith.constant 0 : i32
    return %c0_i32, %c0_i32_0 : i32, i32
  }
  func.func @transform_5(%arg0: i32) -> (i32, i32) {
    %c0_i32 = arith.constant 0 : i32
    %c0_i32_0 = arith.constant 0 : i32
    %c0_i32_1 = arith.constant 0 : i32
    return %c0_i32, %c0_i32_0 : i32, i32
  }
  func.func @transform_6(%arg0: i32) -> (i32, i32) {
    %c0_i32 = arith.constant 0 : i32
    %c0_i32_0 = arith.constant 0 : i32
    %c0_i32_1 = arith.constant 0 : i32
    return %c0_i32, %c0_i32_0 : i32, i32
  }
  func.func @transform_7(%arg0: i32) -> (i32, i32) {
    %c0_i32 = arith.constant 0 : i32
    %c0_i32_0 = arith.constant 0 : i32
    %c0_i32_1 = arith.constant 0 : i32
    return %c0_i32, %c0_i32_0 : i32, i32
  }
  func.func @transform_8(%arg0: i32) -> (i32, i32) {
    %c0_i32 = arith.constant 0 : i32
    %c0_i32_0 = arith.constant 0 : i32
    %c0_i32_1 = arith.constant 0 : i32
    return %c0_i32, %c0_i32_0 : i32, i32
  }
  func.func @transform_9(%arg0: i32) -> (i32, i32) {
    %c0_i32 = arith.constant 0 : i32
    %c0_i32_0 = arith.constant 0 : i32
    return %arg0, %c0_i32 : i32, i32
  }
}

module attributes {stable_mosaic.version = 11 : i64} {
  func.func @_mlp_kernel(%arg0: i32, %arg1: memref<64x16xbf16, #tpu.memory_space<vmem>>, %arg2: memref<16x128xbf16, #tpu.memory_space<vmem>>, %arg3: memref<1x128xf32, #tpu.memory_space<vmem>>, %arg4: memref<128x128xbf16, #tpu.memory_space<vmem>>, %arg5: memref<1x128xf32, #tpu.memory_space<vmem>>, %arg6: memref<128x128xbf16, #tpu.memory_space<vmem>>, %arg7: memref<1x128xf32, #tpu.memory_space<vmem>>, %arg8: memref<128x8xbf16, #tpu.memory_space<vmem>>, %arg9: memref<1x8xf32, #tpu.memory_space<vmem>>, %arg10: memref<64x8xf32, #tpu.memory_space<vmem>>) attributes {dimension_semantics = [#tpu.dimension_semantics<parallel>], iteration_bounds = array<i64: 1>, scalar_prefetch = 0 : i64, scratch_operands = 0 : i64, tpu.core_type = #tpu.core_type<tc>, window_params = [{transform_indices = @transform_0, window_bounds = array<i64: 64, 16>}, {pipeline_mode = #tpu.pipeline_mode<synchronous>, transform_indices = @transform_1, window_bounds = array<i64: 16, 128>}, {pipeline_mode = #tpu.pipeline_mode<synchronous>, transform_indices = @transform_2, window_bounds = array<i64: 1, 128>}, {pipeline_mode = #tpu.pipeline_mode<synchronous>, transform_indices = @transform_3, window_bounds = array<i64: 128, 128>}, {pipeline_mode = #tpu.pipeline_mode<synchronous>, transform_indices = @transform_4, window_bounds = array<i64: 1, 128>}, {pipeline_mode = #tpu.pipeline_mode<synchronous>, transform_indices = @transform_5, window_bounds = array<i64: 128, 128>}, {pipeline_mode = #tpu.pipeline_mode<synchronous>, transform_indices = @transform_6, window_bounds = array<i64: 1, 128>}, {pipeline_mode = #tpu.pipeline_mode<synchronous>, transform_indices = @transform_7, window_bounds = array<i64: 128, 8>}, {pipeline_mode = #tpu.pipeline_mode<synchronous>, transform_indices = @transform_8, window_bounds = array<i64: 1, 8>}, {transform_indices = @transform_9, window_bounds = array<i64: 64, 8>}]} {
    %c0 = arith.constant 0 : index
    %c0_0 = arith.constant 0 : index
    %0 = vector.load %arg1[%c0, %c0_0] : memref<64x16xbf16, #tpu.memory_space<vmem>>, vector<64x16xbf16>
    %c0_1 = arith.constant 0 : index
    %c0_2 = arith.constant 0 : index
    %1 = vector.load %arg2[%c0_1, %c0_2] : memref<16x128xbf16, #tpu.memory_space<vmem>>, vector<16x128xbf16>
    %cst = arith.constant dense<0.000000e+00> : vector<64x128xf32>
    %2 = tpu.matmul %0, %1, %cst {dimension_numbers = #tpu.dot_dimension_numbers<[1], [0], [0], [1], [0, 0, 1, 1], [], []>} : vector<64x16xbf16>, vector<16x128xbf16>, vector<64x128xf32> -> vector<64x128xf32>
    %c0_3 = arith.constant 0 : index
    %c0_4 = arith.constant 0 : index
    %3 = vector.load %arg3[%c0_3, %c0_4] : memref<1x128xf32, #tpu.memory_space<vmem>>, vector<1x128xf32>
    %4 = vector.broadcast %3 : vector<1x128xf32> to vector<64x128xf32>
    %5 = arith.addf %2, %4 : vector<64x128xf32>
    %6 = arith.truncf %5 : vector<64x128xf32> to vector<64x128xbf16>
    %cst_5 = arith.constant 0.000000e+00 : bf16
    %7 = vector.broadcast %cst_5 : bf16 to vector<64x128xbf16>
    %8 = arith.maximumf %6, %7 : vector<64x128xbf16>
    %c0_6 = arith.constant 0 : index
    %c0_7 = arith.constant 0 : index
    %9 = vector.load %arg4[%c0_6, %c0_7] : memref<128x128xbf16, #tpu.memory_space<vmem>>, vector<128x128xbf16>
    %cst_8 = arith.constant dense<0.000000e+00> : vector<64x128xf32>
    %10 = tpu.matmul %8, %9, %cst_8 {dimension_numbers = #tpu.dot_dimension_numbers<[1], [0], [0], [1], [0, 0, 1, 1], [], []>} : vector<64x128xbf16>, vector<128x128xbf16>, vector<64x128xf32> -> vector<64x128xf32>
    %c0_9 = arith.constant 0 : index
    %c0_10 = arith.constant 0 : index
    %11 = vector.load %arg5[%c0_9, %c0_10] : memref<1x128xf32, #tpu.memory_space<vmem>>, vector<1x128xf32>
    %12 = vector.broadcast %11 : vector<1x128xf32> to vector<64x128xf32>
    %13 = arith.addf %10, %12 : vector<64x128xf32>
    %14 = arith.truncf %13 : vector<64x128xf32> to vector<64x128xbf16>
    %cst_11 = arith.constant 0.000000e+00 : bf16
    %15 = vector.broadcast %cst_11 : bf16 to vector<64x128xbf16>
    %16 = arith.maximumf %14, %15 : vector<64x128xbf16>
    %c0_12 = arith.constant 0 : index
    %c0_13 = arith.constant 0 : index
    %17 = vector.load %arg6[%c0_12, %c0_13] : memref<128x128xbf16, #tpu.memory_space<vmem>>, vector<128x128xbf16>
    %cst_14 = arith.constant dense<0.000000e+00> : vector<64x128xf32>
    %18 = tpu.matmul %16, %17, %cst_14 {dimension_numbers = #tpu.dot_dimension_numbers<[1], [0], [0], [1], [0, 0, 1, 1], [], []>} : vector<64x128xbf16>, vector<128x128xbf16>, vector<64x128xf32> -> vector<64x128xf32>
    %c0_15 = arith.constant 0 : index
    %c0_16 = arith.constant 0 : index
    %19 = vector.load %arg7[%c0_15, %c0_16] : memref<1x128xf32, #tpu.memory_space<vmem>>, vector<1x128xf32>
    %20 = vector.broadcast %19 : vector<1x128xf32> to vector<64x128xf32>
    %21 = arith.addf %18, %20 : vector<64x128xf32>
    %22 = arith.truncf %21 : vector<64x128xf32> to vector<64x128xbf16>
    %cst_17 = arith.constant 0.000000e+00 : bf16
    %23 = vector.broadcast %cst_17 : bf16 to vector<64x128xbf16>
    %24 = arith.maximumf %22, %23 : vector<64x128xbf16>
    %c0_18 = arith.constant 0 : index
    %c0_19 = arith.constant 0 : index
    %25 = vector.load %arg8[%c0_18, %c0_19] : memref<128x8xbf16, #tpu.memory_space<vmem>>, vector<128x8xbf16>
    %cst_20 = arith.constant dense<0.000000e+00> : vector<64x8xf32>
    %26 = tpu.matmul %24, %25, %cst_20 {dimension_numbers = #tpu.dot_dimension_numbers<[1], [0], [0], [1], [0, 0, 1, 1], [], []>} : vector<64x128xbf16>, vector<128x8xbf16>, vector<64x8xf32> -> vector<64x8xf32>
    %c0_21 = arith.constant 0 : index
    %c0_22 = arith.constant 0 : index
    %27 = vector.load %arg9[%c0_21, %c0_22] : memref<1x8xf32, #tpu.memory_space<vmem>>, vector<1x8xf32>
    %28 = vector.broadcast %27 : vector<1x8xf32> to vector<64x8xf32>
    %29 = arith.addf %26, %28 : vector<64x8xf32>
    %30 = arith.negf %29 : vector<64x8xf32>
    %31 = math.exp %30 : vector<64x8xf32>
    %cst_23 = arith.constant 1.000000e+00 : f32
    %32 = vector.broadcast %cst_23 : f32 to vector<64x8xf32>
    %33 = arith.addf %32, %31 : vector<64x8xf32>
    %34 = arith.divf %32, %33 : vector<64x8xf32>
    %c0_24 = arith.constant 0 : index
    %c0_25 = arith.constant 0 : index
    %35 = vector.load %arg10[%c0_24, %c0_25] : memref<64x8xf32, #tpu.memory_space<vmem>>, vector<64x8xf32>
    tpu.vector_store %arg10[%c0_24, %c0_25], %34 {strides = array<i32>} : memref<64x8xf32, #tpu.memory_space<vmem>>, vector<64x8xf32>,
    return
  }
  func.func @transform_0(%arg0: i32) -> (i32, i32) {
    %c0_i32 = arith.constant 0 : i32
    %c0_i32_0 = arith.constant 0 : i32
    return %arg0, %c0_i32 : i32, i32
  }
  func.func @transform_1(%arg0: i32) -> (i32, i32) {
    %c0_i32 = arith.constant 0 : i32
    %c0_i32_0 = arith.constant 0 : i32
    %c0_i32_1 = arith.constant 0 : i32
    return %c0_i32, %c0_i32_0 : i32, i32
  }
  func.func @transform_2(%arg0: i32) -> (i32, i32) {
    %c0_i32 = arith.constant 0 : i32
    %c0_i32_0 = arith.constant 0 : i32
    %c0_i32_1 = arith.constant 0 : i32
    return %c0_i32, %c0_i32_0 : i32, i32
  }
  func.func @transform_3(%arg0: i32) -> (i32, i32) {
    %c0_i32 = arith.constant 0 : i32
    %c0_i32_0 = arith.constant 0 : i32
    %c0_i32_1 = arith.constant 0 : i32
    return %c0_i32, %c0_i32_0 : i32, i32
  }
  func.func @transform_4(%arg0: i32) -> (i32, i32) {
    %c0_i32 = arith.constant 0 : i32
    %c0_i32_0 = arith.constant 0 : i32
    %c0_i32_1 = arith.constant 0 : i32
    return %c0_i32, %c0_i32_0 : i32, i32
  }
  func.func @transform_5(%arg0: i32) -> (i32, i32) {
    %c0_i32 = arith.constant 0 : i32
    %c0_i32_0 = arith.constant 0 : i32
    %c0_i32_1 = arith.constant 0 : i32
    return %c0_i32, %c0_i32_0 : i32, i32
  }
  func.func @transform_6(%arg0: i32) -> (i32, i32) {
    %c0_i32 = arith.constant 0 : i32
    %c0_i32_0 = arith.constant 0 : i32
    %c0_i32_1 = arith.constant 0 : i32
    return %c0_i32, %c0_i32_0 : i32, i32
  }
  func.func @transform_7(%arg0: i32) -> (i32, i32) {
    %c0_i32 = arith.constant 0 : i32
    %c0_i32_0 = arith.constant 0 : i32
    %c0_i32_1 = arith.constant 0 : i32
    return %c0_i32, %c0_i32_0 : i32, i32
  }
  func.func @transform_8(%arg0: i32) -> (i32, i32) {
    %c0_i32 = arith.constant 0 : i32
    %c0_i32_0 = arith.constant 0 : i32
    %c0_i32_1 = arith.constant 0 : i32
    return %c0_i32, %c0_i32_0 : i32, i32
  }
  func.func @transform_9(%arg0: i32) -> (i32, i32) {
    %c0_i32 = arith.constant 0 : i32
    %c0_i32_0 = arith.constant 0 : i32
    return %arg0, %c0_i32 : i32, i32
  }
}

</mosaic_0001>

<llo_original>
// kernel: tpu_custom_call.1
$region0: #{tpu_custom_call.1}
  #allocation0 [shape = 'u32[]', space=smem, size = 0x4, offset = 0x4, fixed_abs, tag = 'smem constant byte address 0x4 - core index']
  #allocation1 [shape = 'u32[72,128]{1,0:T(1,128)}', space=vmem, size = 0x9000, scoped, tag = 'internal scratch']
  %s0 = inlined_call_operand.vmem [shape: bf16[64,16], index: 0, kind: input, shape index: {}]
  %s1 = inlined_call_operand.vmem [shape: bf16[16,128], index: 1, kind: input, shape index: {}]
  %s2 = inlined_call_operand.vmem [shape: f32[1,128], index: 2, kind: input, shape index: {}]
  %s3 = inlined_call_operand.vmem [shape: bf16[128,128], index: 3, kind: input, shape index: {}]
  %s4 = inlined_call_operand.vmem [shape: f32[1,128], index: 4, kind: input, shape index: {}]
  %s5 = inlined_call_operand.hbm [shape: bf16[128,128], index: 5, kind: input, shape index: {}]
  %s6 = inlined_call_operand.vmem [shape: f32[1,128], index: 6, kind: input, shape index: {}]
  %s7 = inlined_call_operand.vmem [shape: bf16[128,8], index: 7, kind: input, shape index: {}]
  %s8 = inlined_call_operand.vmem [shape: f32[1,8], index: 8, kind: input, shape index: {}]
  %s9 = inlined_call_operand.vmem [shape: f32[64,8], index: 9, kind: output, shape index: {}]
  %s10 = sld [smem:[#allocation0]]
  $region50: #{tpu_custom_call.1} parent=0
    _
  %s12 = ssub.s32 1, %s10
  %s13 = scalar_select 0, %s12, %s10
  $region1: #{tpu_custom_call.1} parent=0
    #allocation2 [shape = 'u8[32768]{0}', space=vmem, size = 0x8000, scoped, tag = 'input window, operand 5, single buffered']
    #allocation3 [shape = 's32[1]{0}', space=sflag, size = 0x4, scoped, tag = 'scoped memory for tpu_custom_call.1']
    %14 = vsyncpa [#allocation3], 0
    // Predicated region
    $region2: #{tpu_custom_call.1} parent=1 // pred_check
      _
    $region3: #{tpu_custom_call.1} parent=1 // pred_check_branch
      %16 = sbr.rel (0) target = $region5
    $region4: #{tpu_custom_call.1} parent=1 // pred_region
      _
    $region5: #{tpu_custom_call.1} parent=1 // pred_fallthru
      _
    // Predicated region
    $region6: #{tpu_custom_call.1} parent=1 // pred_check
      _
    $region7: #{tpu_custom_call.1} parent=1 // pred_check_branch
      %18 = sbr.rel (0) target = $region9
    $region8: #{tpu_custom_call.1} parent=1 // pred_region
      _
    $region9: #{tpu_custom_call.1} parent=1 // pred_fallthru
      _
    // Predicated region
    $region10: #{tpu_custom_call.1} parent=1 // pred_check
      _
    $region11: #{tpu_custom_call.1} parent=1 // pred_check_branch
      %20 = sbr.rel (0) target = $region13
    $region12: #{tpu_custom_call.1} parent=1 // pred_region
      _
    $region13: #{tpu_custom_call.1} parent=1 // pred_fallthru
      _
    // Predicated region
    $region14: #{tpu_custom_call.1} parent=1 // pred_check
      _
    $region15: #{tpu_custom_call.1} parent=1 // pred_check_branch
      %22 = sbr.rel (0) target = $region17
    $region16: #{tpu_custom_call.1} parent=1 // pred_region
      _
    $region17: #{tpu_custom_call.1} parent=1 // pred_fallthru
      _
    // Predicated region
    $region18: #{tpu_custom_call.1} parent=1 // pred_check
      _
    $region19: #{tpu_custom_call.1} parent=1 // pred_check_branch
      %24 = sbr.rel (0) target = $region21
    $region20: #{tpu_custom_call.1} parent=1 // pred_region
      _
    $region21: #{tpu_custom_call.1} parent=1 // pred_fallthru
      _
    // Predicated region
    $region22: #{tpu_custom_call.1} parent=1 // pred_check
      _
    $region23: #{tpu_custom_call.1} parent=1 // pred_check_branch
      %26 = sbr.rel (0) target = $region25
    $region24: #{tpu_custom_call.1} parent=1 // pred_region
      %28 = vsyncadd [#allocation3], 0
      %s29 = sshll.u32 %s5, 4
      %s30 = int_to_ptr.hbm [resolvable:$true] %s29
      %s31 = sshll.u32 [#allocation2], 4
      %s32 = int_to_ptr.vmem [resolvable:$true] %s31
      %37 = dma.hbm_to_vmem [thread:$0]  %s30, 1024, %s32, [#allocation3], 64, 64, 4
    $region25: #{tpu_custom_call.1} parent=1 // pred_fallthru
      _
    // Predicated region
    $region26: #{tpu_custom_call.1} parent=1 // pred_check
      _
    $region27: #{tpu_custom_call.1} parent=1 // pred_check_branch
      %39 = sbr.rel (0) target = $region29
    $region28: #{tpu_custom_call.1} parent=1 // pred_region
      _
    $region29: #{tpu_custom_call.1} parent=1 // pred_fallthru
      _
    // Predicated region
    $region30: #{tpu_custom_call.1} parent=1 // pred_check
      _
    $region31: #{tpu_custom_call.1} parent=1 // pred_check_branch
      %41 = sbr.rel (0) target = $region33
    $region32: #{tpu_custom_call.1} parent=1 // pred_region
      _
    $region33: #{tpu_custom_call.1} parent=1 // pred_fallthru
      _
    // Predicated region
    $region34: #{tpu_custom_call.1} parent=1 // pred_check
      _
    $region35: #{tpu_custom_call.1} parent=1 // pred_check_branch
      %43 = sbr.rel (0) target = $region37
    $region36: #{tpu_custom_call.1} parent=1 // pred_region
      _
    $region37: #{tpu_custom_call.1} parent=1 // pred_fallthru
      _
    // Predicated region
    $region38: #{tpu_custom_call.1} parent=1 // pred_check
      _
    $region39: #{tpu_custom_call.1} parent=1 // pred_check_branch
      %45 = sbr.rel (0) target = $region41
    $region40: #{tpu_custom_call.1} parent=1 // pred_region
      %47 = dma.done [#allocation3], 1024
    $region41: #{tpu_custom_call.1} parent=1 // pred_fallthru
      _
    %v49 = vld [vmem:[%s0] sm:$0xf]
    %v50 = vld [vmem:[%s0 + $0x4] sm:$0xf]
    %v51 = vld [vmem:[%s0 + $0x8] sm:$0xf]
    %v52 = vld [vmem:[%s0 + $0xc] sm:$0xf]
    %v53 = vld [vmem:[%s0 + $0x10] sm:$0xf]
    %v54 = vld [vmem:[%s0 + $0x14] sm:$0xf]
    %v55 = vld [vmem:[%s0 + $0x18] sm:$0xf]
    %v56 = vld [vmem:[%s0 + $0x1c] sm:$0xf]
    %v57 = vld [vmem:[%s1] sm:$0xf]
    %v58 = vld [vmem:[%s1 + $0x4] sm:$0xf]
    %v59 = vld [vmem:[%s2] sm:$0x1]
    %v61 = vperm.slane %v59, 0
    %v71 = vunpack.c.l.b16 %v49
    %v72 = vunpack.c.l.b16 %v50
    %v73 = vunpack.c.l.b16 %v51
    %v74 = vunpack.c.l.b16 %v52
    %v75 = vunpack.c.l.b16 %v53
    %v76 = vunpack.c.l.b16 %v54
    %v77 = vunpack.c.l.b16 %v55
    %v78 = vunpack.c.l.b16 %v56
    %v79 = vpack.c.b16 %v72, %v71
    %v80 = vpack.c.b16 %v74, %v73
    %v81 = vpack.c.b16 %v76, %v75
    %v82 = vpack.c.b16 %v78, %v77
    %v85 = vunpack.c.l.b16 %v57
    %v86 = vunpack.c.l.b16 %v58
    %v87 = vpack.c.b16 %v86, %v85
    %vm89 = vcmask 130048
    %v91 = vsel %vm89, %v79, 0
    %v94 = vsel %vm89, %v80, 0
    %v97 = vsel %vm89, %v81, 0
    %v100 = vsel %vm89, %v82, 0
    %102 = vmatpush.bf16.msra.mxu0 0
    %103 = vmatpush.bf16.msra.mxu0 0
    %104 = vmatpush.bf16.msra.mxu0 0
    %105 = vmatpush.bf16.msra.mxu0 0
    %106 = vmatpush.bf16.msra.mxu0 0
    %107 = vmatpush.bf16.msra.mxu0 0
    %108 = vmatpush.bf16.msra.mxu0 0
    %109 = vmatpush.bf16.msra.mxu0 %v87
    %110 = vmatmul.bf16.gmra.mxu0 %v91
    %v111 = vpop.f32.mrf.mxu0
    %v112 = vadd.f32 %v61, %v111
    %v113 = vpop.f32.mrf.mxu0
    %v114 = vadd.f32 %v61, %v113
    %115 = vmatmul.bf16.gmra.mxu0 %v94
    %v116 = vpop.f32.mrf.mxu0
    %v117 = vadd.f32 %v61, %v116
    %v118 = vpop.f32.mrf.mxu0
    %v119 = vadd.f32 %v61, %v118
    %120 = vmatmul.bf16.gmra.mxu0 %v97
    %v121 = vpop.f32.mrf.mxu0
    %v122 = vadd.f32 %v61, %v121
    %v123 = vpop.f32.mrf.mxu0
    %v124 = vadd.f32 %v61, %v123
    %125 = vmatmul.bf16.gmra.mxu0 %v100
    %v126 = vpop.f32.mrf.mxu0
    %v127 = vadd.f32 %v61, %v126
    %v128 = vpop.f32.mrf.mxu0
    %v129 = vadd.f32 %v61, %v128
    %130 = vdwg.mxu0
    %v131 = vpack.c.bf16 %v112, %v112
    %v132 = vpack.c.bf16 %v114, %v114
    %v133 = vpack.c.bf16 %v117, %v117
    %v134 = vpack.c.bf16 %v119, %v119
    %v135 = vpack.c.bf16 %v122, %v122
    %v136 = vpack.c.bf16 %v124, %v124
    %v137 = vpack.c.bf16 %v127, %v127
    %v138 = vpack.c.bf16 %v129, %v129
    %v139 = vunpack.c.l.bf16 %v131
    %v140 = vunpack.c.l.bf16 %v132
    %v141 = vunpack.c.l.bf16 %v133
    %v142 = vunpack.c.l.bf16 %v134
    %v143 = vunpack.c.l.bf16 %v135
    %v144 = vunpack.c.l.bf16 %v136
    %v145 = vunpack.c.l.bf16 %v137
    %v146 = vunpack.c.l.bf16 %v138
    %v147 = vmax.f32 %v139, 0.0
    %v148 = vmax.f32 %v140, 0.0
    %v149 = vmax.f32 %v141, 0.0
    %v150 = vmax.f32 %v142, 0.0
    %v151 = vmax.f32 %v143, 0.0
    %v152 = vmax.f32 %v144, 0.0
    %v153 = vmax.f32 %v145, 0.0
    %v154 = vmax.f32 %v146, 0.0
    %v155 = vpack.c.bf16 %v148, %v147
    %v156 = vpack.c.bf16 %v150, %v149
    %v157 = vpack.c.bf16 %v152, %v151
    %v158 = vpack.c.bf16 %v154, %v153
    %v159 = vld [vmem:[%s3] sm:$0xf]
    %v160 = vld [vmem:[%s3 + $0x4] sm:$0xf]
    %v161 = vld [vmem:[%s3 + $0x8] sm:$0xf]
    %v162 = vld [vmem:[%s3 + $0xc] sm:$0xf]
    %v163 = vld [vmem:[%s3 + $0x10] sm:$0xf]
    %v164 = vld [vmem:[%s3 + $0x14] sm:$0xf]
    %v165 = vld [vmem:[%s3 + $0x18] sm:$0xf]
    %v166 = vld [vmem:[%s3 + $0x1c] sm:$0xf]
    %v167 = vld [vmem:[%s3 + $0x20] sm:$0xf]
    %v168 = vld [vmem:[%s3 + $0x24] sm:$0xf]
    %v169 = vld [vmem:[%s3 + $0x28] sm:$0xf]
    %v170 = vld [vmem:[%s3 + $0x2c] sm:$0xf]
    %v171 = vld [vmem:[%s3 + $0x30] sm:$0xf]
    %v172 = vld [vmem:[%s3 + $0x34] sm:$0xf]
    %v173 = vld [vmem:[%s3 + $0x38] sm:$0xf]
    %v174 = vld [vmem:[%s3 + $0x3c] sm:$0xf]
    %v175 = vld [vmem:[%s4] sm:$0x1]
    %v177 = vperm.slane %v175, 0
    %v195 = vunpack.c.l.b16 %v159
    %v196 = vunpack.c.l.b16 %v160
    %v197 = vunpack.c.l.b16 %v161
    %v198 = vunpack.c.l.b16 %v162
    %v199 = vunpack.c.l.b16 %v163
    %v200 = vunpack.c.l.b16 %v164
    %v201 = vunpack.c.l.b16 %v165
    %v202 = vunpack.c.l.b16 %v166
    %v203 = vunpack.c.l.b16 %v167
    %v204 = vunpack.c.l.b16 %v168
    %v205 = vunpack.c.l.b16 %v169
    %v206 = vunpack.c.l.b16 %v170
    %v207 = vunpack.c.l.b16 %v171
    %v208 = vunpack.c.l.b16 %v172
    %v209 = vunpack.c.l.b16 %v173
    %v210 = vunpack.c.l.b16 %v174
    %v211 = vpack.c.b16 %v196, %v195
    %v212 = vpack.c.b16 %v198, %v197
    %v213 = vpack.c.b16 %v200, %v199
    %v214 = vpack.c.b16 %v202, %v201
    %v215 = vpack.c.b16 %v204, %v203
    %v216 = vpack.c.b16 %v206, %v205
    %v217 = vpack.c.b16 %v208, %v207
    %v218 = vpack.c.b16 %v210, %v209
    %227 = vmatpush.bf16.msra.mxu0 %v218
    %228 = vmatpush.bf16.msra.mxu0 %v217
    %229 = vmatpush.bf16.msra.mxu0 %v216
    %230 = vmatpush.bf16.msra.mxu0 %v215
    %231 = vmatpush.bf16.msra.mxu0 %v214
    %232 = vmatpush.bf16.msra.mxu0 %v213
    %233 = vmatpush.bf16.msra.mxu0 %v212
    %234 = vmatpush.bf16.msra.mxu0 %v211
    %235 = vmatmul.bf16.gmra.mxu0 %v155
    %v236 = vpop.f32.mrf.mxu0
    %v237 = vadd.f32 %v177, %v236
    %v238 = vpop.f32.mrf.mxu0
    %v239 = vadd.f32 %v177, %v238
    %240 = vmatmul.bf16.gmra.mxu0 %v156
    %v241 = vpop.f32.mrf.mxu0
    %v242 = vadd.f32 %v177, %v241
    %v243 = vpop.f32.mrf.mxu0
    %v244 = vadd.f32 %v177, %v243
    %245 = vmatmul.bf16.gmra.mxu0 %v157
    %v246 = vpop.f32.mrf.mxu0
    %v247 = vadd.f32 %v177, %v246
    %v248 = vpop.f32.mrf.mxu0
    %v249 = vadd.f32 %v177, %v248
    %250 = vmatmul.bf16.gmra.mxu0 %v158
    %v251 = vpop.f32.mrf.mxu0
    %v252 = vadd.f32 %v177, %v251
    %v253 = vpop.f32.mrf.mxu0
    %v254 = vadd.f32 %v177, %v253
    %255 = vdwg.mxu0
    %v256 = vpack.c.bf16 %v237, %v237
    %v257 = vpack.c.bf16 %v239, %v239
    %v258 = vpack.c.bf16 %v242, %v242
    %v259 = vpack.c.bf16 %v244, %v244
    %v260 = vpack.c.bf16 %v247, %v247
    %v261 = vpack.c.bf16 %v249, %v249
    %v262 = vpack.c.bf16 %v252, %v252
    %v263 = vpack.c.bf16 %v254, %v254
    %v264 = vunpack.c.l.bf16 %v256
    %v265 = vunpack.c.l.bf16 %v257
    %v266 = vunpack.c.l.bf16 %v258
    %v267 = vunpack.c.l.bf16 %v259
    %v268 = vunpack.c.l.bf16 %v260
    %v269 = vunpack.c.l.bf16 %v261
    %v270 = vunpack.c.l.bf16 %v262
    %v271 = vunpack.c.l.bf16 %v263
    %v272 = vmax.f32 %v264, 0.0
    %v273 = vmax.f32 %v265, 0.0
    %v274 = vmax.f32 %v266, 0.0
    %v275 = vmax.f32 %v267, 0.0
    %v276 = vmax.f32 %v268, 0.0
    %v277 = vmax.f32 %v269, 0.0
    %v278 = vmax.f32 %v270, 0.0
    %v279 = vmax.f32 %v271, 0.0
    %v280 = vpack.c.bf16 %v273, %v272
    %v281 = vpack.c.bf16 %v275, %v274
    %v282 = vpack.c.bf16 %v277, %v276
    %v283 = vpack.c.bf16 %v279, %v278
    %v284 = vld [vmem:[#allocation2] sm:$0xf]
    %v285 = vld [vmem:[#allocation2 + $0x4] sm:$0xf]
    %v286 = vld [vmem:[#allocation2 + $0x8] sm:$0xf]
    %v287 = vld [vmem:[#allocation2 + $0xc] sm:$0xf]
    %v288 = vld [vmem:[#allocation2 + $0x10] sm:$0xf]
    %v289 = vld [vmem:[#allocation2 + $0x14] sm:$0xf]
    %v290 = vld [vmem:[#allocation2 + $0x18] sm:$0xf]
    %v291 = vld [vmem:[#allocation2 + $0x1c] sm:$0xf]
    %v292 = vld [vmem:[#allocation2 + $0x20] sm:$0xf]
    %v293 = vld [vmem:[#allocation2 + $0x24] sm:$0xf]
    %v294 = vld [vmem:[#allocation2 + $0x28] sm:$0xf]
    %v295 = vld [vmem:[#allocation2 + $0x2c] sm:$0xf]
    %v296 = vld [vmem:[#allocation2 + $0x30] sm:$0xf]
    %v297 = vld [vmem:[#allocation2 + $0x34] sm:$0xf]
    %v298 = vld [vmem:[#allocation2 + $0x38] sm:$0xf]
    %v299 = vld [vmem:[#allocation2 + $0x3c] sm:$0xf]
    %v300 = vld [vmem:[%s6] sm:$0x1]
    %v302 = vperm.slane %v300, 0
    %v320 = vunpack.c.l.b16 %v284
    %v321 = vunpack.c.l.b16 %v285
    %v322 = vunpack.c.l.b16 %v286
    %v323 = vunpack.c.l.b16 %v287
    %v324 = vunpack.c.l.b16 %v288
    %v325 = vunpack.c.l.b16 %v289
    %v326 = vunpack.c.l.b16 %v290
    %v327 = vunpack.c.l.b16 %v291
    %v328 = vunpack.c.l.b16 %v292
    %v329 = vunpack.c.l.b16 %v293
    %v330 = vunpack.c.l.b16 %v294
    %v331 = vunpack.c.l.b16 %v295
    %v332 = vunpack.c.l.b16 %v296
    %v333 = vunpack.c.l.b16 %v297
    %v334 = vunpack.c.l.b16 %v298
    %v335 = vunpack.c.l.b16 %v299
    %v336 = vpack.c.b16 %v321, %v320
    %v337 = vpack.c.b16 %v323, %v322
    %v338 = vpack.c.b16 %v325, %v324
    %v339 = vpack.c.b16 %v327, %v326
    %v340 = vpack.c.b16 %v329, %v328
    %v341 = vpack.c.b16 %v331, %v330
    %v342 = vpack.c.b16 %v333, %v332
    %v343 = vpack.c.b16 %v335, %v334
    %352 = vmatpush.bf16.msra.mxu0 %v343
    %353 = vmatpush.bf16.msra.mxu0 %v342
    %354 = vmatpush.bf16.msra.mxu0 %v341
    %355 = vmatpush.bf16.msra.mxu0 %v340
    %356 = vmatpush.bf16.msra.mxu0 %v339
    %357 = vmatpush.bf16.msra.mxu0 %v338
    %358 = vmatpush.bf16.msra.mxu0 %v337
    %359 = vmatpush.bf16.msra.mxu0 %v336
    %360 = vmatmul.bf16.gmra.mxu0 %v280
    %v361 = vpop.f32.mrf.mxu0
    %v362 = vadd.f32 %v302, %v361
    %v363 = vpop.f32.mrf.mxu0
    %v364 = vadd.f32 %v302, %v363
    %365 = vmatmul.bf16.gmra.mxu0 %v281
    %v366 = vpop.f32.mrf.mxu0
    %v367 = vadd.f32 %v302, %v366
    %v368 = vpop.f32.mrf.mxu0
    %v369 = vadd.f32 %v302, %v368
    %370 = vmatmul.bf16.gmra.mxu0 %v282
    %v371 = vpop.f32.mrf.mxu0
    %v372 = vadd.f32 %v302, %v371
    %v373 = vpop.f32.mrf.mxu0
    %v374 = vadd.f32 %v302, %v373
    %375 = vmatmul.bf16.gmra.mxu0 %v283
    %v376 = vpop.f32.mrf.mxu0
    %v377 = vadd.f32 %v302, %v376
    %v378 = vpop.f32.mrf.mxu0
    %v379 = vadd.f32 %v302, %v378
    %380 = vdwg.mxu0
    %v381 = vpack.c.bf16 %v362, %v362
    %v382 = vpack.c.bf16 %v364, %v364
    %v383 = vpack.c.bf16 %v367, %v367
    %v384 = vpack.c.bf16 %v369, %v369
    %v385 = vpack.c.bf16 %v372, %v372
    %v386 = vpack.c.bf16 %v374, %v374
    %v387 = vpack.c.bf16 %v377, %v377
    %v388 = vpack.c.bf16 %v379, %v379
    %v389 = vunpack.c.l.bf16 %v381
    %v390 = vunpack.c.l.bf16 %v382
    %v391 = vunpack.c.l.bf16 %v383
    %v392 = vunpack.c.l.bf16 %v384
    %v393 = vunpack.c.l.bf16 %v385
    %v394 = vunpack.c.l.bf16 %v386
    %v395 = vunpack.c.l.bf16 %v387
    %v396 = vunpack.c.l.bf16 %v388
    %v397 = vmax.f32 %v389, 0.0
    %v398 = vmax.f32 %v390, 0.0
    %v399 = vmax.f32 %v391, 0.0
    %v400 = vmax.f32 %v392, 0.0
    %v401 = vmax.f32 %v393, 0.0
    %v402 = vmax.f32 %v394, 0.0
    %v403 = vmax.f32 %v395, 0.0
    %v404 = vmax.f32 %v396, 0.0
    %v405 = vpack.c.bf16 %v398, %v397
    %v406 = vpack.c.bf16 %v400, %v399
    %v407 = vpack.c.bf16 %v402, %v401
    %v408 = vpack.c.bf16 %v404, %v403
    %v409 = vld [vmem:[%s7] sm:$0xf]
    %v410 = vld [vmem:[%s7 + $0x4] sm:$0xf]
    %v411 = vld [vmem:[%s7 + $0x8] sm:$0xf]
    %v412 = vld [vmem:[%s7 + $0xc] sm:$0xf]
    %v413 = vld [vmem:[%s7 + $0x10] sm:$0xf]
    %v414 = vld [vmem:[%s7 + $0x14] sm:$0xf]
    %v415 = vld [vmem:[%s7 + $0x18] sm:$0xf]
    %v416 = vld [vmem:[%s7 + $0x1c] sm:$0xf]
    %v417 = vld [vmem:[%s7 + $0x20] sm:$0xf]
    %v418 = vld [vmem:[%s7 + $0x24] sm:$0xf]
    %v419 = vld [vmem:[%s7 + $0x28] sm:$0xf]
    %v420 = vld [vmem:[%s7 + $0x2c] sm:$0xf]
    %v421 = vld [vmem:[%s7 + $0x30] sm:$0xf]
    %v422 = vld [vmem:[%s7 + $0x34] sm:$0xf]
    %v423 = vld [vmem:[%s7 + $0x38] sm:$0xf]
    %v424 = vld [vmem:[%s7 + $0x3c] sm:$0xf]
    %v425 = vld [vmem:[%s8] sm:$0x1]
    %v427 = vperm.slane %v425, 0
    %v445 = vunpack.c.l.b16 %v409
    %v446 = vunpack.c.l.b16 %v410
    %v447 = vunpack.c.l.b16 %v411
    %v448 = vunpack.c.l.b16 %v412
    %v449 = vunpack.c.l.b16 %v413
    %v450 = vunpack.c.l.b16 %v414
    %v451 = vunpack.c.l.b16 %v415
    %v452 = vunpack.c.l.b16 %v416
    %v453 = vunpack.c.l.b16 %v417
    %v454 = vunpack.c.l.b16 %v418
    %v455 = vunpack.c.l.b16 %v419
    %v456 = vunpack.c.l.b16 %v420
    %v457 = vunpack.c.l.b16 %v421
    %v458 = vunpack.c.l.b16 %v422
    %v459 = vunpack.c.l.b16 %v423
    %v460 = vunpack.c.l.b16 %v424
    %v461 = vpack.c.b16 %v446, %v445
    %v462 = vpack.c.b16 %v448, %v447
    %v463 = vpack.c.b16 %v450, %v449
    %v464 = vpack.c.b16 %v452, %v451
    %v465 = vpack.c.b16 %v454, %v453
    %v466 = vpack.c.b16 %v456, %v455
    %v467 = vpack.c.b16 %v458, %v457
    %v468 = vpack.c.b16 %v460, %v459
    %477 = vmatpush.bf16.msra.mxu0 %v468
    %478 = vmatpush.bf16.msra.mxu0 %v467
    %479 = vmatpush.bf16.msra.mxu0 %v466
    %480 = vmatpush.bf16.msra.mxu0 %v465
    %481 = vmatpush.bf16.msra.mxu0 %v464
    %482 = vmatpush.bf16.msra.mxu0 %v463
    %483 = vmatpush.bf16.msra.mxu0 %v462
    %484 = vmatpush.bf16.msra.mxu0 %v461
    %485 = vmatmul.bf16.gmra.mxu0 %v405
    %v486 = vpop.f32.mrf.mxu0
    %v487 = vadd.f32 %v427, %v486
    %v488 = vpop.f32.mrf.mxu0
    %v489 = vadd.f32 %v427, %v488
    %490 = vmatmul.bf16.gmra.mxu0 %v406
    %v491 = vpop.f32.mrf.mxu0
    %v492 = vadd.f32 %v427, %v491
    %v493 = vpop.f32.mrf.mxu0
    %v494 = vadd.f32 %v427, %v493
    %495 = vmatmul.bf16.gmra.mxu0 %v407
    %v496 = vpop.f32.mrf.mxu0
    %v497 = vadd.f32 %v427, %v496
    %v498 = vpop.f32.mrf.mxu0
    %v499 = vadd.f32 %v427, %v498
    %500 = vmatmul.bf16.gmra.mxu0 %v408
    %v501 = vpop.f32.mrf.mxu0
    %v502 = vadd.f32 %v427, %v501
    %v503 = vpop.f32.mrf.mxu0
    %v504 = vadd.f32 %v427, %v503
    %505 = vdwg.mxu0
    %v506 = vxor.u32 %v487, 2147483648
    %v507 = vxor.u32 %v489, 2147483648
    %v508 = vxor.u32 %v492, 2147483648
    %v509 = vxor.u32 %v494, 2147483648
    %v510 = vxor.u32 %v497, 2147483648
    %v511 = vxor.u32 %v499, 2147483648
    %v512 = vxor.u32 %v502, 2147483648
    %v513 = vxor.u32 %v504, 2147483648
    %v514 = vmul.f32 %v506, 1.442695
    %v515 = vpow.pop %v514
    %v516 = vmul.f32 %v507, 1.442695
    %v517 = vpow.pop %v516
    %v518 = vmul.f32 %v508, 1.442695
    %v519 = vpow.pop %v518
    %v520 = vmul.f32 %v509, 1.442695
    %v521 = vpow.pop %v520
    %v522 = vmul.f32 %v510, 1.442695
    %v523 = vpow.pop %v522
    %v524 = vmul.f32 %v511, 1.442695
    %v525 = vpow.pop %v524
    %v526 = vmul.f32 %v512, 1.442695
    %v527 = vpow.pop %v526
    %v528 = vmul.f32 %v513, 1.442695
    %v529 = vpow.pop %v528
    %v530 = vadd.f32 %v515, 1.0
    %v531 = vadd.f32 %v517, 1.0
    %v532 = vadd.f32 %v519, 1.0
    %v533 = vadd.f32 %v521, 1.0
    %v534 = vadd.f32 %v523, 1.0
    %v535 = vadd.f32 %v525, 1.0
    %v536 = vadd.f32 %v527, 1.0
    %v537 = vadd.f32 %v529, 1.0
    %v538 = vrcp.pop %v530
    %v539 = vmul.f32 %v530, %v538
    %v540 = vsub.f32 1.0, %v539
    %v541 = vmul.f32 %v538, %v540
    %v542 = vadd.f32 %v538, %v541
    %vm543 = vweird.f32 %v530
    %vm544 = vweird.f32 %v538
    %vm545 = vmor %vm543, %vm544
    %v546 = vsel %vm545, %v538, %v542
    %v547 = vand.u32 2147483647, %v530
    %vm548 = vcmp.eq.f32.partialorder %v547, 8.507059e+37
    %v549 = vand.u32 %v530, 2147483648
    %v550 = vor.u32 1.1754944e-38, %v549
    %v551 = vsel %vm548, %v550, %v546
    %v552 = vmul.f32 1.0, %v551
    %v553 = vrcp.pop %v531
    %v554 = vmul.f32 %v531, %v553
    %v555 = vsub.f32 1.0, %v554
    %v556 = vmul.f32 %v553, %v555
    %v557 = vadd.f32 %v553, %v556
    %vm558 = vweird.f32 %v531
    %vm559 = vweird.f32 %v553
    %vm560 = vmor %vm558, %vm559
    %v561 = vsel %vm560, %v553, %v557
    %v562 = vand.u32 2147483647, %v531
    %vm563 = vcmp.eq.f32.partialorder %v562, 8.507059e+37
    %v564 = vand.u32 %v531, 2147483648
    %v565 = vor.u32 1.1754944e-38, %v564
    %v566 = vsel %vm563, %v565, %v561
    %v567 = vmul.f32 1.0, %v566
    %v568 = vrcp.pop %v532
    %v569 = vmul.f32 %v532, %v568
    %v570 = vsub.f32 1.0, %v569
    %v571 = vmul.f32 %v568, %v570
    %v572 = vadd.f32 %v568, %v571
    %vm573 = vweird.f32 %v532
    %vm574 = vweird.f32 %v568
    %vm575 = vmor %vm573, %vm574
    %v576 = vsel %vm575, %v568, %v572
    %v577 = vand.u32 2147483647, %v532
    %vm578 = vcmp.eq.f32.partialorder %v577, 8.507059e+37
    %v579 = vand.u32 %v532, 2147483648
    %v580 = vor.u32 1.1754944e-38, %v579
    %v581 = vsel %vm578, %v580, %v576
    %v582 = vmul.f32 1.0, %v581
    %v583 = vrcp.pop %v533
    %v584 = vmul.f32 %v533, %v583
    %v585 = vsub.f32 1.0, %v584
    %v586 = vmul.f32 %v583, %v585
    %v587 = vadd.f32 %v583, %v586
    %vm588 = vweird.f32 %v533
    %vm589 = vweird.f32 %v583
    %vm590 = vmor %vm588, %vm589
    %v591 = vsel %vm590, %v583, %v587
    %v592 = vand.u32 2147483647, %v533
    %vm593 = vcmp.eq.f32.partialorder %v592, 8.507059e+37
    %v594 = vand.u32 %v533, 2147483648
    %v595 = vor.u32 1.1754944e-38, %v594
    %v596 = vsel %vm593, %v595, %v591
    %v597 = vmul.f32 1.0, %v596
    %v598 = vrcp.pop %v534
    %v599 = vmul.f32 %v534, %v598
    %v600 = vsub.f32 1.0, %v599
    %v601 = vmul.f32 %v598, %v600
    %v602 = vadd.f32 %v598, %v601
    %vm603 = vweird.f32 %v534
    %vm604 = vweird.f32 %v598
    %vm605 = vmor %vm603, %vm604
    %v606 = vsel %vm605, %v598, %v602
    %v607 = vand.u32 2147483647, %v534
    %vm608 = vcmp.eq.f32.partialorder %v607, 8.507059e+37
    %v609 = vand.u32 %v534, 2147483648
    %v610 = vor.u32 1.1754944e-38, %v609
    %v611 = vsel %vm608, %v610, %v606
    %v612 = vmul.f32 1.0, %v611
    %v613 = vrcp.pop %v535
    %v614 = vmul.f32 %v535, %v613
    %v615 = vsub.f32 1.0, %v614
    %v616 = vmul.f32 %v613, %v615
    %v617 = vadd.f32 %v613, %v616
    %vm618 = vweird.f32 %v535
    %vm619 = vweird.f32 %v613
    %vm620 = vmor %vm618, %vm619
    %v621 = vsel %vm620, %v613, %v617
    %v622 = vand.u32 2147483647, %v535
    %vm623 = vcmp.eq.f32.partialorder %v622, 8.507059e+37
    %v624 = vand.u32 %v535, 2147483648
    %v625 = vor.u32 1.1754944e-38, %v624
    %v626 = vsel %vm623, %v625, %v621
    %v627 = vmul.f32 1.0, %v626
    %v628 = vrcp.pop %v536
    %v629 = vmul.f32 %v536, %v628
    %v630 = vsub.f32 1.0, %v629
    %v631 = vmul.f32 %v628, %v630
    %v632 = vadd.f32 %v628, %v631
    %vm633 = vweird.f32 %v536
    %vm634 = vweird.f32 %v628
    %vm635 = vmor %vm633, %vm634
    %v636 = vsel %vm635, %v628, %v632
    %v637 = vand.u32 2147483647, %v536
    %vm638 = vcmp.eq.f32.partialorder %v637, 8.507059e+37
    %v639 = vand.u32 %v536, 2147483648
    %v640 = vor.u32 1.1754944e-38, %v639
    %v641 = vsel %vm638, %v640, %v636
    %v642 = vmul.f32 1.0, %v641
    %v643 = vrcp.pop %v537
    %v644 = vmul.f32 %v537, %v643
    %v645 = vsub.f32 1.0, %v644
    %v646 = vmul.f32 %v643, %v645
    %v647 = vadd.f32 %v643, %v646
    %vm648 = vweird.f32 %v537
    %vm649 = vweird.f32 %v643
    %vm650 = vmor %vm648, %vm649
    %v651 = vsel %vm650, %v643, %v647
    %v652 = vand.u32 2147483647, %v537
    %vm653 = vcmp.eq.f32.partialorder %v652, 8.507059e+37
    %v654 = vand.u32 %v537, 2147483648
    %v655 = vor.u32 1.1754944e-38, %v654
    %v656 = vsel %vm653, %v655, %v651
    %v657 = vmul.f32 1.0, %v656
    %vm658 = vcmask 64512
    %659 = vst.msk [vmem:[%s9] sm:$0xff] %vm658, %v552
    %660 = vst.msk [vmem:[%s9 + $0x8] sm:$0xff] %vm658, %v567
    %661 = vst.msk [vmem:[%s9 + $0x10] sm:$0xff] %vm658, %v582
    %662 = vst.msk [vmem:[%s9 + $0x18] sm:$0xff] %vm658, %v597
    %663 = vst.msk [vmem:[%s9 + $0x20] sm:$0xff] %vm658, %v612
    %664 = vst.msk [vmem:[%s9 + $0x28] sm:$0xff] %vm658, %v627
    %665 = vst.msk [vmem:[%s9 + $0x30] sm:$0xff] %vm658, %v642
    %666 = vst.msk [vmem:[%s9 + $0x38] sm:$0xff] %vm658, %v657
    // Predicated region
    $region42: #{tpu_custom_call.1} parent=1 // pred_check
      _
    $region43: #{tpu_custom_call.1} parent=1 // pred_check_branch
      %668 = sbr.rel (0) target = $region45
    $region44: #{tpu_custom_call.1} parent=1 // pred_region
      _
    $region45: #{tpu_custom_call.1} parent=1 // pred_fallthru
      _
    // Predicated region
    $region46: #{tpu_custom_call.1} parent=1 // pred_check
      _
    $region47: #{tpu_custom_call.1} parent=1 // pred_check_branch
      %670 = sbr.rel (0) target = $region49
    $region48: #{tpu_custom_call.1} parent=1 // pred_region
      _
    $region49: #{tpu_custom_call.1} parent=1 // pred_fallthru
      _
    %671 = vsyncpa [#allocation3], 1

// kernel: tpu_custom_call.1
$region0: #{tpu_custom_call.1}
  #allocation0 [shape = 'u32[]', space=smem, size = 0x4, offset = 0x4, fixed_abs, tag = 'smem constant byte address 0x4 - core index']
  #allocation1 [shape = 'u32[72,128]{1,0:T(1,128)}', space=vmem, size = 0x9000, scoped, tag = 'internal scratch']
  %s0 = inlined_call_operand.vmem [shape: bf16[64,16], index: 0, kind: input, shape index: {}]
  %s1 = inlined_call_operand.vmem [shape: bf16[16,128], index: 1, kind: input, shape index: {}]
  %s2 = inlined_call_operand.vmem [shape: f32[1,128], index: 2, kind: input, shape index: {}]
  %s3 = inlined_call_operand.vmem [shape: bf16[128,128], index: 3, kind: input, shape index: {}]
  %s4 = inlined_call_operand.vmem [shape: f32[1,128], index: 4, kind: input, shape index: {}]
  %s5 = inlined_call_operand.hbm [shape: bf16[128,128], index: 5, kind: input, shape index: {}]
  %s6 = inlined_call_operand.vmem [shape: f32[1,128], index: 6, kind: input, shape index: {}]
  %s7 = inlined_call_operand.vmem [shape: bf16[128,8], index: 7, kind: input, shape index: {}]
  %s8 = inlined_call_operand.vmem [shape: f32[1,8], index: 8, kind: input, shape index: {}]
  %s9 = inlined_call_operand.vmem [shape: f32[64,8], index: 9, kind: output, shape index: {}]
  %s10 = sld [smem:[#allocation0]]
  $region50: #{tpu_custom_call.1} parent=0
    _
  %s12 = ssub.s32 1, %s10
  %s13 = scalar_select 0, %s12, %s10
  $region1: #{tpu_custom_call.1} parent=0
    #allocation2 [shape = 'u8[32768]{0}', space=vmem, size = 0x8000, scoped, tag = 'input window, operand 5, single buffered']
    #allocation3 [shape = 's32[1]{0}', space=sflag, size = 0x4, scoped, tag = 'scoped memory for tpu_custom_call.1']
    %14 = vsyncpa [#allocation3], 0
    // Predicated region
    $region2: #{tpu_custom_call.1} parent=1 // pred_check
      _
    $region3: #{tpu_custom_call.1} parent=1 // pred_check_branch
      %16 = sbr.rel (0) target = $region5
    $region4: #{tpu_custom_call.1} parent=1 // pred_region
      _
    $region5: #{tpu_custom_call.1} parent=1 // pred_fallthru
      _
    // Predicated region
    $region6: #{tpu_custom_call.1} parent=1 // pred_check
      _
    $region7: #{tpu_custom_call.1} parent=1 // pred_check_branch
      %18 = sbr.rel (0) target = $region9
    $region8: #{tpu_custom_call.1} parent=1 // pred_region
      _
    $region9: #{tpu_custom_call.1} parent=1 // pred_fallthru
      _
    // Predicated region
    $region10: #{tpu_custom_call.1} parent=1 // pred_check
      _
    $region11: #{tpu_custom_call.1} parent=1 // pred_check_branch
      %20 = sbr.rel (0) target = $region13
    $region12: #{tpu_custom_call.1} parent=1 // pred_region
      _
    $region13: #{tpu_custom_call.1} parent=1 // pred_fallthru
      _
    // Predicated region
    $region14: #{tpu_custom_call.1} parent=1 // pred_check
      _
    $region15: #{tpu_custom_call.1} parent=1 // pred_check_branch
      %22 = sbr.rel (0) target = $region17
    $region16: #{tpu_custom_call.1} parent=1 // pred_region
      _
    $region17: #{tpu_custom_call.1} parent=1 // pred_fallthru
      _
    // Predicated region
    $region18: #{tpu_custom_call.1} parent=1 // pred_check
      _
    $region19: #{tpu_custom_call.1} parent=1 // pred_check_branch
      %24 = sbr.rel (0) target = $region21
    $region20: #{tpu_custom_call.1} parent=1 // pred_region
      _
    $region21: #{tpu_custom_call.1} parent=1 // pred_fallthru
      _
    // Predicated region
    $region22: #{tpu_custom_call.1} parent=1 // pred_check
      _
    $region23: #{tpu_custom_call.1} parent=1 // pred_check_branch
      %26 = sbr.rel (0) target = $region25
    $region24: #{tpu_custom_call.1} parent=1 // pred_region
      %28 = vsyncadd [#allocation3], 0
      %s29 = sshll.u32 %s5, 4
      %s30 = int_to_ptr.hbm [resolvable:$true] %s29
      %s31 = sshll.u32 [#allocation2], 4
      %s32 = int_to_ptr.vmem [resolvable:$true] %s31
      %37 = dma.hbm_to_vmem [thread:$0]  %s30, 1024, %s32, [#allocation3], 64, 64, 4
    $region25: #{tpu_custom_call.1} parent=1 // pred_fallthru
      _
    // Predicated region
    $region26: #{tpu_custom_call.1} parent=1 // pred_check
      _
    $region27: #{tpu_custom_call.1} parent=1 // pred_check_branch
      %39 = sbr.rel (0) target = $region29
    $region28: #{tpu_custom_call.1} parent=1 // pred_region
      _
    $region29: #{tpu_custom_call.1} parent=1 // pred_fallthru
      _
    // Predicated region
    $region30: #{tpu_custom_call.1} parent=1 // pred_check
      _
    $region31: #{tpu_custom_call.1} parent=1 // pred_check_branch
      %41 = sbr.rel (0) target = $region33
    $region32: #{tpu_custom_call.1} parent=1 // pred_region
      _
    $region33: #{tpu_custom_call.1} parent=1 // pred_fallthru
      _
    // Predicated region
    $region34: #{tpu_custom_call.1} parent=1 // pred_check
      _
    $region35: #{tpu_custom_call.1} parent=1 // pred_check_branch
      %43 = sbr.rel (0) target = $region37
    $region36: #{tpu_custom_call.1} parent=1 // pred_region
      _
    $region37: #{tpu_custom_call.1} parent=1 // pred_fallthru
      _
    // Predicated region
    $region38: #{tpu_custom_call.1} parent=1 // pred_check
      _
    $region39: #{tpu_custom_call.1} parent=1 // pred_check_branch
      %45 = sbr.rel (0) target = $region41
    $region40: #{tpu_custom_call.1} parent=1 // pred_region
      %47 = dma.done [#allocation3], 1024
    $region41: #{tpu_custom_call.1} parent=1 // pred_fallthru
      _
    %v49 = vld [vmem:[%s0] sm:$0xf]
    %v50 = vld [vmem:[%s0 + $0x4] sm:$0xf]
    %v51 = vld [vmem:[%s0 + $0x8] sm:$0xf]
    %v52 = vld [vmem:[%s0 + $0xc] sm:$0xf]
    %v53 = vld [vmem:[%s0 + $0x10] sm:$0xf]
    %v54 = vld [vmem:[%s0 + $0x14] sm:$0xf]
    %v55 = vld [vmem:[%s0 + $0x18] sm:$0xf]
    %v56 = vld [vmem:[%s0 + $0x1c] sm:$0xf]
    %v57 = vld [vmem:[%s1] sm:$0xf]
    %v58 = vld [vmem:[%s1 + $0x4] sm:$0xf]
    %v59 = vld [vmem:[%s2] sm:$0x1]
    %v61 = vperm.slane %v59, 0
    %v71 = vunpack.c.l.b16 %v49
    %v72 = vunpack.c.l.b16 %v50
    %v73 = vunpack.c.l.b16 %v51
    %v74 = vunpack.c.l.b16 %v52
    %v75 = vunpack.c.l.b16 %v53
    %v76 = vunpack.c.l.b16 %v54
    %v77 = vunpack.c.l.b16 %v55
    %v78 = vunpack.c.l.b16 %v56
    %v79 = vpack.c.b16 %v72, %v71
    %v80 = vpack.c.b16 %v74, %v73
    %v81 = vpack.c.b16 %v76, %v75
    %v82 = vpack.c.b16 %v78, %v77
    %v85 = vunpack.c.l.b16 %v57
    %v86 = vunpack.c.l.b16 %v58
    %v87 = vpack.c.b16 %v86, %v85
    %vm89 = vcmask 130048
    %v91 = vsel %vm89, %v79, 0
    %v94 = vsel %vm89, %v80, 0
    %v97 = vsel %vm89, %v81, 0
    %v100 = vsel %vm89, %v82, 0
    %102 = vmatpush.bf16.msra.mxu0 0
    %103 = vmatpush.bf16.msra.mxu0 0
    %104 = vmatpush.bf16.msra.mxu0 0
    %105 = vmatpush.bf16.msra.mxu0 0
    %106 = vmatpush.bf16.msra.mxu0 0
    %107 = vmatpush.bf16.msra.mxu0 0
    %108 = vmatpush.bf16.msra.mxu0 0
    %109 = vmatpush.bf16.msra.mxu0 %v87
    %110 = vmatmul.bf16.gmra.mxu0 %v91
    %v111 = vpop.f32.mrf.mxu0
    %v112 = vadd.f32 %v61, %v111
    %v113 = vpop.f32.mrf.mxu0
    %v114 = vadd.f32 %v61, %v113
    %115 = vmatmul.bf16.gmra.mxu0 %v94
    %v116 = vpop.f32.mrf.mxu0
    %v117 = vadd.f32 %v61, %v116
    %v118 = vpop.f32.mrf.mxu0
    %v119 = vadd.f32 %v61, %v118
    %120 = vmatmul.bf16.gmra.mxu0 %v97
    %v121 = vpop.f32.mrf.mxu0
    %v122 = vadd.f32 %v61, %v121
    %v123 = vpop.f32.mrf.mxu0
    %v124 = vadd.f32 %v61, %v123
    %125 = vmatmul.bf16.gmra.mxu0 %v100
    %v126 = vpop.f32.mrf.mxu0
    %v127 = vadd.f32 %v61, %v126
    %v128 = vpop.f32.mrf.mxu0
    %v129 = vadd.f32 %v61, %v128
    %130 = vdwg.mxu0
    %v131 = vpack.c.bf16 %v112, %v112
    %v132 = vpack.c.bf16 %v114, %v114
    %v133 = vpack.c.bf16 %v117, %v117
    %v134 = vpack.c.bf16 %v119, %v119
    %v135 = vpack.c.bf16 %v122, %v122
    %v136 = vpack.c.bf16 %v124, %v124
    %v137 = vpack.c.bf16 %v127, %v127
    %v138 = vpack.c.bf16 %v129, %v129
    %v139 = vunpack.c.l.bf16 %v131
    %v140 = vunpack.c.l.bf16 %v132
    %v141 = vunpack.c.l.bf16 %v133
    %v142 = vunpack.c.l.bf16 %v134
    %v143 = vunpack.c.l.bf16 %v135
    %v144 = vunpack.c.l.bf16 %v136
    %v145 = vunpack.c.l.bf16 %v137
    %v146 = vunpack.c.l.bf16 %v138
    %v147 = vmax.f32 %v139, 0.0
    %v148 = vmax.f32 %v140, 0.0
    %v149 = vmax.f32 %v141, 0.0
    %v150 = vmax.f32 %v142, 0.0
    %v151 = vmax.f32 %v143, 0.0
    %v152 = vmax.f32 %v144, 0.0
    %v153 = vmax.f32 %v145, 0.0
    %v154 = vmax.f32 %v146, 0.0
    %v155 = vpack.c.bf16 %v148, %v147
    %v156 = vpack.c.bf16 %v150, %v149
    %v157 = vpack.c.bf16 %v152, %v151
    %v158 = vpack.c.bf16 %v154, %v153
    %v159 = vld [vmem:[%s3] sm:$0xf]
    %v160 = vld [vmem:[%s3 + $0x4] sm:$0xf]
    %v161 = vld [vmem:[%s3 + $0x8] sm:$0xf]
    %v162 = vld [vmem:[%s3 + $0xc] sm:$0xf]
    %v163 = vld [vmem:[%s3 + $0x10] sm:$0xf]
    %v164 = vld [vmem:[%s3 + $0x14] sm:$0xf]
    %v165 = vld [vmem:[%s3 + $0x18] sm:$0xf]
    %v166 = vld [vmem:[%s3 + $0x1c] sm:$0xf]
    %v167 = vld [vmem:[%s3 + $0x20] sm:$0xf]
    %v168 = vld [vmem:[%s3 + $0x24] sm:$0xf]
    %v169 = vld [vmem:[%s3 + $0x28] sm:$0xf]
    %v170 = vld [vmem:[%s3 + $0x2c] sm:$0xf]
    %v171 = vld [vmem:[%s3 + $0x30] sm:$0xf]
    %v172 = vld [vmem:[%s3 + $0x34] sm:$0xf]
    %v173 = vld [vmem:[%s3 + $0x38] sm:$0xf]
    %v174 = vld [vmem:[%s3 + $0x3c] sm:$0xf]
    %v175 = vld [vmem:[%s4] sm:$0x1]
    %v177 = vperm.slane %v175, 0
    %v195 = vunpack.c.l.b16 %v159
    %v196 = vunpack.c.l.b16 %v160
    %v197 = vunpack.c.l.b16 %v161
    %v198 = vunpack.c.l.b16 %v162
    %v199 = vunpack.c.l.b16 %v163
    %v200 = vunpack.c.l.b16 %v164
    %v201 = vunpack.c.l.b16 %v165
    %v202 = vunpack.c.l.b16 %v166
    %v203 = vunpack.c.l.b16 %v167
    %v204 = vunpack.c.l.b16 %v168
    %v205 = vunpack.c.l.b16 %v169
    %v206 = vunpack.c.l.b16 %v170
    %v207 = vunpack.c.l.b16 %v171
    %v208 = vunpack.c.l.b16 %v172
    %v209 = vunpack.c.l.b16 %v173
    %v210 = vunpack.c.l.b16 %v174
    %v211 = vpack.c.b16 %v196, %v195
    %v212 = vpack.c.b16 %v198, %v197
    %v213 = vpack.c.b16 %v200, %v199
    %v214 = vpack.c.b16 %v202, %v201
    %v215 = vpack.c.b16 %v204, %v203
    %v216 = vpack.c.b16 %v206, %v205
    %v217 = vpack.c.b16 %v208, %v207
    %v218 = vpack.c.b16 %v210, %v209
    %227 = vmatpush.bf16.msra.mxu0 %v218
    %228 = vmatpush.bf16.msra.mxu0 %v217
    %229 = vmatpush.bf16.msra.mxu0 %v216
    %230 = vmatpush.bf16.msra.mxu0 %v215
    %231 = vmatpush.bf16.msra.mxu0 %v214
    %232 = vmatpush.bf16.msra.mxu0 %v213
    %233 = vmatpush.bf16.msra.mxu0 %v212
    %234 = vmatpush.bf16.msra.mxu0 %v211
    %235 = vmatmul.bf16.gmra.mxu0 %v155
    %v236 = vpop.f32.mrf.mxu0
    %v237 = vadd.f32 %v177, %v236
    %v238 = vpop.f32.mrf.mxu0
    %v239 = vadd.f32 %v177, %v238
    %240 = vmatmul.bf16.gmra.mxu0 %v156
    %v241 = vpop.f32.mrf.mxu0
    %v242 = vadd.f32 %v177, %v241
    %v243 = vpop.f32.mrf.mxu0
    %v244 = vadd.f32 %v177, %v243
    %245 = vmatmul.bf16.gmra.mxu0 %v157
    %v246 = vpop.f32.mrf.mxu0
    %v247 = vadd.f32 %v177, %v246
    %v248 = vpop.f32.mrf.mxu0
    %v249 = vadd.f32 %v177, %v248
    %250 = vmatmul.bf16.gmra.mxu0 %v158
    %v251 = vpop.f32.mrf.mxu0
    %v252 = vadd.f32 %v177, %v251
    %v253 = vpop.f32.mrf.mxu0
    %v254 = vadd.f32 %v177, %v253
    %255 = vdwg.mxu0
    %v256 = vpack.c.bf16 %v237, %v237
    %v257 = vpack.c.bf16 %v239, %v239
    %v258 = vpack.c.bf16 %v242, %v242
    %v259 = vpack.c.bf16 %v244, %v244
    %v260 = vpack.c.bf16 %v247, %v247
    %v261 = vpack.c.bf16 %v249, %v249
    %v262 = vpack.c.bf16 %v252, %v252
    %v263 = vpack.c.bf16 %v254, %v254
    %v264 = vunpack.c.l.bf16 %v256
    %v265 = vunpack.c.l.bf16 %v257
    %v266 = vunpack.c.l.bf16 %v258
    %v267 = vunpack.c.l.bf16 %v259
    %v268 = vunpack.c.l.bf16 %v260
    %v269 = vunpack.c.l.bf16 %v261
    %v270 = vunpack.c.l.bf16 %v262
    %v271 = vunpack.c.l.bf16 %v263
    %v272 = vmax.f32 %v264, 0.0
    %v273 = vmax.f32 %v265, 0.0
    %v274 = vmax.f32 %v266, 0.0
    %v275 = vmax.f32 %v267, 0.0
    %v276 = vmax.f32 %v268, 0.0
    %v277 = vmax.f32 %v269, 0.0
    %v278 = vmax.f32 %v270, 0.0
    %v279 = vmax.f32 %v271, 0.0
    %v280 = vpack.c.bf16 %v273, %v272
    %v281 = vpack.c.bf16 %v275, %v274
    %v282 = vpack.c.bf16 %v277, %v276
    %v283 = vpack.c.bf16 %v279, %v278
    %v284 = vld [vmem:[#allocation2] sm:$0xf]
    %v285 = vld [vmem:[#allocation2 + $0x4] sm:$0xf]
    %v286 = vld [vmem:[#allocation2 + $0x8] sm:$0xf]
    %v287 = vld [vmem:[#allocation2 + $0xc] sm:$0xf]
    %v288 = vld [vmem:[#allocation2 + $0x10] sm:$0xf]
    %v289 = vld [vmem:[#allocation2 + $0x14] sm:$0xf]
    %v290 = vld [vmem:[#allocation2 + $0x18] sm:$0xf]
    %v291 = vld [vmem:[#allocation2 + $0x1c] sm:$0xf]
    %v292 = vld [vmem:[#allocation2 + $0x20] sm:$0xf]
    %v293 = vld [vmem:[#allocation2 + $0x24] sm:$0xf]
    %v294 = vld [vmem:[#allocation2 + $0x28] sm:$0xf]
    %v295 = vld [vmem:[#allocation2 + $0x2c] sm:$0xf]
    %v296 = vld [vmem:[#allocation2 + $0x30] sm:$0xf]
    %v297 = vld [vmem:[#allocation2 + $0x34] sm:$0xf]
    %v298 = vld [vmem:[#allocation2 + $0x38] sm:$0xf]
    %v299 = vld [vmem:[#allocation2 + $0x3c] sm:$0xf]
    %v300 = vld [vmem:[%s6] sm:$0x1]
    %v302 = vperm.slane %v300, 0
    %v320 = vunpack.c.l.b16 %v284
    %v321 = vunpack.c.l.b16 %v285
    %v322 = vunpack.c.l.b16 %v286
    %v323 = vunpack.c.l.b16 %v287
    %v324 = vunpack.c.l.b16 %v288
    %v325 = vunpack.c.l.b16 %v289
    %v326 = vunpack.c.l.b16 %v290
    %v327 = vunpack.c.l.b16 %v291
    %v328 = vunpack.c.l.b16 %v292
    %v329 = vunpack.c.l.b16 %v293
    %v330 = vunpack.c.l.b16 %v294
    %v331 = vunpack.c.l.b16 %v295
    %v332 = vunpack.c.l.b16 %v296
    %v333 = vunpack.c.l.b16 %v297
    %v334 = vunpack.c.l.b16 %v298
    %v335 = vunpack.c.l.b16 %v299
    %v336 = vpack.c.b16 %v321, %v320
    %v337 = vpack.c.b16 %v323, %v322
    %v338 = vpack.c.b16 %v325, %v324
    %v339 = vpack.c.b16 %v327, %v326
    %v340 = vpack.c.b16 %v329, %v328
    %v341 = vpack.c.b16 %v331, %v330
    %v342 = vpack.c.b16 %v333, %v332
    %v343 = vpack.c.b16 %v335, %v334
    %352 = vmatpush.bf16.msra.mxu0 %v343
    %353 = vmatpush.bf16.msra.mxu0 %v342
    %354 = vmatpush.bf16.msra.mxu0 %v341
    %355 = vmatpush.bf16.msra.mxu0 %v340
    %356 = vmatpush.bf16.msra.mxu0 %v339
    %357 = vmatpush.bf16.msra.mxu0 %v338
    %358 = vmatpush.bf16.msra.mxu0 %v337
    %359 = vmatpush.bf16.msra.mxu0 %v336
    %360 = vmatmul.bf16.gmra.mxu0 %v280
    %v361 = vpop.f32.mrf.mxu0
    %v362 = vadd.f32 %v302, %v361
    %v363 = vpop.f32.mrf.mxu0
    %v364 = vadd.f32 %v302, %v363
    %365 = vmatmul.bf16.gmra.mxu0 %v281
    %v366 = vpop.f32.mrf.mxu0
    %v367 = vadd.f32 %v302, %v366
    %v368 = vpop.f32.mrf.mxu0
    %v369 = vadd.f32 %v302, %v368
    %370 = vmatmul.bf16.gmra.mxu0 %v282
    %v371 = vpop.f32.mrf.mxu0
    %v372 = vadd.f32 %v302, %v371
    %v373 = vpop.f32.mrf.mxu0
    %v374 = vadd.f32 %v302, %v373
    %375 = vmatmul.bf16.gmra.mxu0 %v283
    %v376 = vpop.f32.mrf.mxu0
    %v377 = vadd.f32 %v302, %v376
    %v378 = vpop.f32.mrf.mxu0
    %v379 = vadd.f32 %v302, %v378
    %380 = vdwg.mxu0
    %v381 = vpack.c.bf16 %v362, %v362
    %v382 = vpack.c.bf16 %v364, %v364
    %v383 = vpack.c.bf16 %v367, %v367
    %v384 = vpack.c.bf16 %v369, %v369
    %v385 = vpack.c.bf16 %v372, %v372
    %v386 = vpack.c.bf16 %v374, %v374
    %v387 = vpack.c.bf16 %v377, %v377
    %v388 = vpack.c.bf16 %v379, %v379
    %v389 = vunpack.c.l.bf16 %v381
    %v390 = vunpack.c.l.bf16 %v382
    %v391 = vunpack.c.l.bf16 %v383
    %v392 = vunpack.c.l.bf16 %v384
    %v393 = vunpack.c.l.bf16 %v385
    %v394 = vunpack.c.l.bf16 %v386
    %v395 = vunpack.c.l.bf16 %v387
    %v396 = vunpack.c.l.bf16 %v388
    %v397 = vmax.f32 %v389, 0.0
    %v398 = vmax.f32 %v390, 0.0
    %v399 = vmax.f32 %v391, 0.0
    %v400 = vmax.f32 %v392, 0.0
    %v401 = vmax.f32 %v393, 0.0
    %v402 = vmax.f32 %v394, 0.0
    %v403 = vmax.f32 %v395, 0.0
    %v404 = vmax.f32 %v396, 0.0
    %v405 = vpack.c.bf16 %v398, %v397
    %v406 = vpack.c.bf16 %v400, %v399
    %v407 = vpack.c.bf16 %v402, %v401
    %v408 = vpack.c.bf16 %v404, %v403
    %v409 = vld [vmem:[%s7] sm:$0xf]
    %v410 = vld [vmem:[%s7 + $0x4] sm:$0xf]
    %v411 = vld [vmem:[%s7 + $0x8] sm:$0xf]
    %v412 = vld [vmem:[%s7 + $0xc] sm:$0xf]
    %v413 = vld [vmem:[%s7 + $0x10] sm:$0xf]
    %v414 = vld [vmem:[%s7 + $0x14] sm:$0xf]
    %v415 = vld [vmem:[%s7 + $0x18] sm:$0xf]
    %v416 = vld [vmem:[%s7 + $0x1c] sm:$0xf]
    %v417 = vld [vmem:[%s7 + $0x20] sm:$0xf]
    %v418 = vld [vmem:[%s7 + $0x24] sm:$0xf]
    %v419 = vld [vmem:[%s7 + $0x28] sm:$0xf]
    %v420 = vld [vmem:[%s7 + $0x2c] sm:$0xf]
    %v421 = vld [vmem:[%s7 + $0x30] sm:$0xf]
    %v422 = vld [vmem:[%s7 + $0x34] sm:$0xf]
    %v423 = vld [vmem:[%s7 + $0x38] sm:$0xf]
    %v424 = vld [vmem:[%s7 + $0x3c] sm:$0xf]
    %v425 = vld [vmem:[%s8] sm:$0x1]
    %v427 = vperm.slane %v425, 0
    %v445 = vunpack.c.l.b16 %v409
    %v446 = vunpack.c.l.b16 %v410
    %v447 = vunpack.c.l.b16 %v411
    %v448 = vunpack.c.l.b16 %v412
    %v449 = vunpack.c.l.b16 %v413
    %v450 = vunpack.c.l.b16 %v414
    %v451 = vunpack.c.l.b16 %v415
    %v452 = vunpack.c.l.b16 %v416
    %v453 = vunpack.c.l.b16 %v417
    %v454 = vunpack.c.l.b16 %v418
    %v455 = vunpack.c.l.b16 %v419
    %v456 = vunpack.c.l.b16 %v420
    %v457 = vunpack.c.l.b16 %v421
    %v458 = vunpack.c.l.b16 %v422
    %v459 = vunpack.c.l.b16 %v423
    %v460 = vunpack.c.l.b16 %v424
    %v461 = vpack.c.b16 %v446, %v445
    %v462 = vpack.c.b16 %v448, %v447
    %v463 = vpack.c.b16 %v450, %v449
    %v464 = vpack.c.b16 %v452, %v451
    %v465 = vpack.c.b16 %v454, %v453
    %v466 = vpack.c.b16 %v456, %v455
    %v467 = vpack.c.b16 %v458, %v457
    %v468 = vpack.c.b16 %v460, %v459
    %477 = vmatpush.bf16.msra.mxu0 %v468
    %478 = vmatpush.bf16.msra.mxu0 %v467
    %479 = vmatpush.bf16.msra.mxu0 %v466
    %480 = vmatpush.bf16.msra.mxu0 %v465
    %481 = vmatpush.bf16.msra.mxu0 %v464
    %482 = vmatpush.bf16.msra.mxu0 %v463
    %483 = vmatpush.bf16.msra.mxu0 %v462
    %484 = vmatpush.bf16.msra.mxu0 %v461
    %485 = vmatmul.bf16.gmra.mxu0 %v405
    %v486 = vpop.f32.mrf.mxu0
    %v487 = vadd.f32 %v427, %v486
    %v488 = vpop.f32.mrf.mxu0
    %v489 = vadd.f32 %v427, %v488
    %490 = vmatmul.bf16.gmra.mxu0 %v406
    %v491 = vpop.f32.mrf.mxu0
    %v492 = vadd.f32 %v427, %v491
    %v493 = vpop.f32.mrf.mxu0
    %v494 = vadd.f32 %v427, %v493
    %495 = vmatmul.bf16.gmra.mxu0 %v407
    %v496 = vpop.f32.mrf.mxu0
    %v497 = vadd.f32 %v427, %v496
    %v498 = vpop.f32.mrf.mxu0
    %v499 = vadd.f32 %v427, %v498
    %500 = vmatmul.bf16.gmra.mxu0 %v408
    %v501 = vpop.f32.mrf.mxu0
    %v502 = vadd.f32 %v427, %v501
    %v503 = vpop.f32.mrf.mxu0
    %v504 = vadd.f32 %v427, %v503
    %505 = vdwg.mxu0
    %v506 = vxor.u32 %v487, 2147483648
    %v507 = vxor.u32 %v489, 2147483648
    %v508 = vxor.u32 %v492, 2147483648
    %v509 = vxor.u32 %v494, 2147483648
    %v510 = vxor.u32 %v497, 2147483648
    %v511 = vxor.u32 %v499, 2147483648
    %v512 = vxor.u32 %v502, 2147483648
    %v513 = vxor.u32 %v504, 2147483648
    %v514 = vmul.f32 %v506, 1.442695
    %v515 = vpow.pop %v514
    %v516 = vmul.f32 %v507, 1.442695
    %v517 = vpow.pop %v516
    %v518 = vmul.f32 %v508, 1.442695
    %v519 = vpow.pop %v518
    %v520 = vmul.f32 %v509, 1.442695
    %v521 = vpow.pop %v520
    %v522 = vmul.f32 %v510, 1.442695
    %v523 = vpow.pop %v522
    %v524 = vmul.f32 %v511, 1.442695
    %v525 = vpow.pop %v524
    %v526 = vmul.f32 %v512, 1.442695
    %v527 = vpow.pop %v526
    %v528 = vmul.f32 %v513, 1.442695
    %v529 = vpow.pop %v528
    %v530 = vadd.f32 %v515, 1.0
    %v531 = vadd.f32 %v517, 1.0
    %v532 = vadd.f32 %v519, 1.0
    %v533 = vadd.f32 %v521, 1.0
    %v534 = vadd.f32 %v523, 1.0
    %v535 = vadd.f32 %v525, 1.0
    %v536 = vadd.f32 %v527, 1.0
    %v537 = vadd.f32 %v529, 1.0
    %v538 = vrcp.pop %v530
    %v539 = vmul.f32 %v530, %v538
    %v540 = vsub.f32 1.0, %v539
    %v541 = vmul.f32 %v538, %v540
    %v542 = vadd.f32 %v538, %v541
    %vm543 = vweird.f32 %v530
    %vm544 = vweird.f32 %v538
    %vm545 = vmor %vm543, %vm544
    %v546 = vsel %vm545, %v538, %v542
    %v547 = vand.u32 2147483647, %v530
    %vm548 = vcmp.eq.f32.partialorder %v547, 8.507059e+37
    %v549 = vand.u32 %v530, 2147483648
    %v550 = vor.u32 1.1754944e-38, %v549
    %v551 = vsel %vm548, %v550, %v546
    %v552 = vmul.f32 1.0, %v551
    %v553 = vrcp.pop %v531
    %v554 = vmul.f32 %v531, %v553
    %v555 = vsub.f32 1.0, %v554
    %v556 = vmul.f32 %v553, %v555
    %v557 = vadd.f32 %v553, %v556
    %vm558 = vweird.f32 %v531
    %vm559 = vweird.f32 %v553
    %vm560 = vmor %vm558, %vm559
    %v561 = vsel %vm560, %v553, %v557
    %v562 = vand.u32 2147483647, %v531
    %vm563 = vcmp.eq.f32.partialorder %v562, 8.507059e+37
    %v564 = vand.u32 %v531, 2147483648
    %v565 = vor.u32 1.1754944e-38, %v564
    %v566 = vsel %vm563, %v565, %v561
    %v567 = vmul.f32 1.0, %v566
    %v568 = vrcp.pop %v532
    %v569 = vmul.f32 %v532, %v568
    %v570 = vsub.f32 1.0, %v569
    %v571 = vmul.f32 %v568, %v570
    %v572 = vadd.f32 %v568, %v571
    %vm573 = vweird.f32 %v532
    %vm574 = vweird.f32 %v568
    %vm575 = vmor %vm573, %vm574
    %v576 = vsel %vm575, %v568, %v572
    %v577 = vand.u32 2147483647, %v532
    %vm578 = vcmp.eq.f32.partialorder %v577, 8.507059e+37
    %v579 = vand.u32 %v532, 2147483648
    %v580 = vor.u32 1.1754944e-38, %v579
    %v581 = vsel %vm578, %v580, %v576
    %v582 = vmul.f32 1.0, %v581
    %v583 = vrcp.pop %v533
    %v584 = vmul.f32 %v533, %v583
    %v585 = vsub.f32 1.0, %v584
    %v586 = vmul.f32 %v583, %v585
    %v587 = vadd.f32 %v583, %v586
    %vm588 = vweird.f32 %v533
    %vm589 = vweird.f32 %v583
    %vm590 = vmor %vm588, %vm589
    %v591 = vsel %vm590, %v583, %v587
    %v592 = vand.u32 2147483647, %v533
    %vm593 = vcmp.eq.f32.partialorder %v592, 8.507059e+37
    %v594 = vand.u32 %v533, 2147483648
    %v595 = vor.u32 1.1754944e-38, %v594
    %v596 = vsel %vm593, %v595, %v591
    %v597 = vmul.f32 1.0, %v596
    %v598 = vrcp.pop %v534
    %v599 = vmul.f32 %v534, %v598
    %v600 = vsub.f32 1.0, %v599
    %v601 = vmul.f32 %v598, %v600
    %v602 = vadd.f32 %v598, %v601
    %vm603 = vweird.f32 %v534
    %vm604 = vweird.f32 %v598
    %vm605 = vmor %vm603, %vm604
    %v606 = vsel %vm605, %v598, %v602
    %v607 = vand.u32 2147483647, %v534
    %vm608 = vcmp.eq.f32.partialorder %v607, 8.507059e+37
    %v609 = vand.u32 %v534, 2147483648
    %v610 = vor.u32 1.1754944e-38, %v609
    %v611 = vsel %vm608, %v610, %v606
    %v612 = vmul.f32 1.0, %v611
    %v613 = vrcp.pop %v535
    %v614 = vmul.f32 %v535, %v613
    %v615 = vsub.f32 1.0, %v614
    %v616 = vmul.f32 %v613, %v615
    %v617 = vadd.f32 %v613, %v616
    %vm618 = vweird.f32 %v535
    %vm619 = vweird.f32 %v613
    %vm620 = vmor %vm618, %vm619
    %v621 = vsel %vm620, %v613, %v617
    %v622 = vand.u32 2147483647, %v535
    %vm623 = vcmp.eq.f32.partialorder %v622, 8.507059e+37
    %v624 = vand.u32 %v535, 2147483648
    %v625 = vor.u32 1.1754944e-38, %v624
    %v626 = vsel %vm623, %v625, %v621
    %v627 = vmul.f32 1.0, %v626
    %v628 = vrcp.pop %v536
    %v629 = vmul.f32 %v536, %v628
    %v630 = vsub.f32 1.0, %v629
    %v631 = vmul.f32 %v628, %v630
    %v632 = vadd.f32 %v628, %v631
    %vm633 = vweird.f32 %v536
    %vm634 = vweird.f32 %v628
    %vm635 = vmor %vm633, %vm634
    %v636 = vsel %vm635, %v628, %v632
    %v637 = vand.u32 2147483647, %v536
    %vm638 = vcmp.eq.f32.partialorder %v637, 8.507059e+37
    %v639 = vand.u32 %v536, 2147483648
    %v640 = vor.u32 1.1754944e-38, %v639
    %v641 = vsel %vm638, %v640, %v636
    %v642 = vmul.f32 1.0, %v641
    %v643 = vrcp.pop %v537
    %v644 = vmul.f32 %v537, %v643
    %v645 = vsub.f32 1.0, %v644
    %v646 = vmul.f32 %v643, %v645
    %v647 = vadd.f32 %v643, %v646
    %vm648 = vweird.f32 %v537
    %vm649 = vweird.f32 %v643
    %vm650 = vmor %vm648, %vm649
    %v651 = vsel %vm650, %v643, %v647
    %v652 = vand.u32 2147483647, %v537
    %vm653 = vcmp.eq.f32.partialorder %v652, 8.507059e+37
    %v654 = vand.u32 %v537, 2147483648
    %v655 = vor.u32 1.1754944e-38, %v654
    %v656 = vsel %vm653, %v655, %v651
    %v657 = vmul.f32 1.0, %v656
    %vm658 = vcmask 64512
    %659 = vst.msk [vmem:[%s9] sm:$0xff] %vm658, %v552
    %660 = vst.msk [vmem:[%s9 + $0x8] sm:$0xff] %vm658, %v567
    %661 = vst.msk [vmem:[%s9 + $0x10] sm:$0xff] %vm658, %v582
    %662 = vst.msk [vmem:[%s9 + $0x18] sm:$0xff] %vm658, %v597
    %663 = vst.msk [vmem:[%s9 + $0x20] sm:$0xff] %vm658, %v612
    %664 = vst.msk [vmem:[%s9 + $0x28] sm:$0xff] %vm658, %v627
    %665 = vst.msk [vmem:[%s9 + $0x30] sm:$0xff] %vm658, %v642
    %666 = vst.msk [vmem:[%s9 + $0x38] sm:$0xff] %vm658, %v657
    // Predicated region
    $region42: #{tpu_custom_call.1} parent=1 // pred_check
      _
    $region43: #{tpu_custom_call.1} parent=1 // pred_check_branch
      %668 = sbr.rel (0) target = $region45
    $region44: #{tpu_custom_call.1} parent=1 // pred_region
      _
    $region45: #{tpu_custom_call.1} parent=1 // pred_fallthru
      _
    // Predicated region
    $region46: #{tpu_custom_call.1} parent=1 // pred_check
      _
    $region47: #{tpu_custom_call.1} parent=1 // pred_check_branch
      %670 = sbr.rel (0) target = $region49
    $region48: #{tpu_custom_call.1} parent=1 // pred_region
      _
    $region49: #{tpu_custom_call.1} parent=1 // pred_fallthru
      _
    %671 = vsyncpa [#allocation3], 1

</llo_original>
